<compile_context>
chip_gen: v7x
topology: tpu7x:2x2x1
jax: 0.10.0
libtpu: 0.0.40
codegen_flags: <defaults>
</compile_context>

<pallas_src>
import functools

import jax
import jax.numpy as jnp
from jax.experimental import pallas as pl
from jax.experimental.pallas import tpu as pltpu


def _round_up(n, m):
    return ((n + m - 1) // m) * m


# Row layout of the packed (8, Hp) broadcast-vector block.
_ROW_STATE, _ROW_LNW, _ROW_LNB, _ROW_MK, _ROW_MR = 0, 1, 2, 3, 4


def _ffn_kernel(x_ref, halo_ref, vec_ref, wk_ref, wr_ref, wv_ref,
                out_ref, state_out_ref,
                xk_sc, r_sc, v_sc,
                *, inv_h, eps, last_row):
    t = pl.program_id(0)          # seq-tile axis ("parallel": no cross-tile carry)
    i = pl.program_id(1)          # intermediate-dim reduction axis ("arbitrary")
    ni = pl.num_programs(1)

    # ---------------- prologue: runs once per seq tile (i == 0) ----------------
    @pl.when(i == 0)
    def _prologue():
        lnw = vec_ref[_ROW_LNW:_ROW_LNW + 1, :]
        lnb = vec_ref[_ROW_LNB:_ROW_LNB + 1, :]

        def layer_norm(v):
            # One-pass LN over the TRUE hidden size (padded lanes are zero, so they do
            # not perturb the statistics).  Clamp the variance: E[x^2]-E[x]^2 can go
            # slightly negative under cancellation -> would NaN through rsqrt.
            s1 = jnp.sum(v, axis=-1, keepdims=True) * inv_h
            s2 = jnp.sum(v * v, axis=-1, keepdims=True) * inv_h
            var = jnp.maximum(s2 - s1 * s1, 0.0)
            return (v - s1) * jax.lax.rsqrt(var + eps) * lnw + lnb

        x_raw = x_ref[...]                              # (TT, Hp) f32, pre-LN
        xn = layer_norm(x_raw)

        # Previous post-LN token for row 0 of this tile:
        #   t == 0 -> external state (already post-LN in RWKV, used as-is like PyTorch)
        #   t  > 0 -> LayerNorm of the raw halo row (last pre-LN row of previous tile).
        # Using a halo input (instead of a sequential carry) keeps the seq axis parallel.
        halo_ln = layer_norm(halo_ref[0])               # (1, Hp)
        prev = jnp.where(t == 0, vec_ref[_ROW_STATE:_ROW_STATE + 1, :], halo_ln)

        # Token shift: roll down one row (XLU), splice `prev` into row 0.
        shifted = pltpu.roll(xn, shift=1, axis=0)
        row = jax.lax.broadcasted_iota(jnp.int32, xn.shape, 0)
        past = jnp.where(row == 0, prev, shifted)
        sx = past - xn

        xk = xn + sx * vec_ref[_ROW_MK:_ROW_MK + 1, :]
        xr = xn + sx * vec_ref[_ROW_MR:_ROW_MR + 1, :]

        # Cache bf16 xk for the reduction loop; compute receptance once per seq tile.
        xk_sc[...] = xk.astype(jnp.bfloat16)
        # TODO(synk): on v7x (64 MiB VMEM) r_sc could be bf16 to save TT*Hp*2 bytes.
        r_sc[...] = jax.nn.sigmoid(
            jnp.dot(xr.astype(jnp.bfloat16), wr_ref[...],
                    preferred_element_type=jnp.float32))
        v_sc[...] = jnp.zeros_like(v_sc)

        # Per-tile post-LN "last" row (tile-indexed output so the seq axis stays
        # megacore-parallel); the wrapper keeps the row of the tile holding the true
        # last token.
        state_out_ref[0] = xn[last_row:last_row + 1, :]

    # ------------- per intermediate-dim tile: key / value reduction -------------
    k = jnp.dot(xk_sc[...], wk_ref[...], preferred_element_type=jnp.float32)
    k = jnp.maximum(k, 0.0)
    k = k * k                                           # relu(.)^2 in f32
    v_sc[...] = v_sc[...] + jnp.dot(k.astype(jnp.bfloat16), wv_ref[...],
                                    preferred_element_type=jnp.float32)

    # ---------------- epilogue: last intermediate tile ----------------
    @pl.when(i == ni - 1)
    def _epilogue():
        out_ref[...] = r_sc[...] * v_sc[...] + x_ref[...]   # residual uses pre-LN x


def prepare_ffn_params(params):
    """One-time parameter prep: transpose to (in, out), pad to 128 multiples, cast bf16,
    and pack the broadcast vectors into one lane-dense block."""
    H = params["ln2_w"].shape[-1]
    I = params["key_w"].shape[0]                 # PyTorch Linear weight is (out, in)
    Hp = _round_up(H, 128)
    Ip = _round_up(I, 128)

    def pad_vec(v):
        v = jnp.asarray(v, jnp.float32).reshape(1, -1)
        return jnp.pad(v, ((0, 0), (0, Hp - v.shape[1])))

    def pad_mat(w, rows, cols):
        w = jnp.asarray(w, jnp.float32)
        return jnp.pad(w, ((0, rows - w.shape[0]), (0, cols - w.shape[1])))

    # Rows 1..4 of the packed (8, Hp) broadcast block (row 0 = runtime state).
    vec_params = jnp.concatenate(
        [pad_vec(params["ln2_w"]), pad_vec(params["ln2_b"]),
         pad_vec(params["time_maa_k"]), pad_vec(params["time_maa_r"]),
         jnp.zeros((3, Hp), jnp.float32)], axis=0)       # (7, Hp)

    return {
        "H": H, "I": I, "Hp": Hp, "Ip": Ip,
        "vec_params": vec_params,
        # (in, out) layout, lane-dense padded, bf16 for the MXU / halved HBM traffic.
        "wk": pad_mat(params["key_w"].T, Hp, Ip).astype(jnp.bfloat16),
        "wr": pad_mat(params["receptance_w"].T, Hp, Hp).astype(jnp.bfloat16),
        "wv": pad_mat(params["value_w"].T, Ip, Hp).astype(jnp.bfloat16),
    }


def rwkv6_feed_forward(x, state, prep, *, t_tile=512, i_tile=1024,
                       weight_resident=None):
    """x: (1, T, H) f32; state: (1, H) f32.  Returns (out (1,T,H), state_out (1,H))."""
    assert x.shape[0] == 1               # the PyTorch module asserts batch_size == 1
    T, H = x.shape[1], x.shape[2]
    Hp, Ip = prep["Hp"], prep["Ip"]

    # ---- generation-aware VMEM budget (v5e/v6e: 128 MiB, v7x: 64 MiB per core) ----
    try:
        vmem_cap = int(pltpu.get_tpu_info().vmem_capacity_bytes)
    except Exception:
        vmem_cap = 64 * 1024 * 1024            # conservative fallback (v7x per-core)
    vmem_limit = max(32 * 1024 * 1024,
                     min(vmem_cap - 16 * 1024 * 1024, 112 * 1024 * 1024))
    budget = int(vmem_limit * 0.9)

    # ---- seq tiling: multiple of 8 sublanes; big tiles amortize weight streaming ----
    TT = min(max(t_tile, 8), _round_up(T, 8))
    TT = _round_up(TT, 8)
    Tp = _round_up(T, TT)
    nt = Tp // TT

    # Rough per-core working set of activations/scratch (x,out double-buffered f32;
    # xk bf16; r,v f32; small vectors).
    act_bytes = 26 * TT * Hp + 64 * Hp
    wr_bytes = 2 * Hp * Hp                                 # Wr bf16, single-buffered
    w_all_bytes = 2 * (Hp * Ip + Hp * Hp + Ip * Hp)        # all weights bf16, resident

    # Full weight residency (one grid step over I) vs intermediate-dim reduction tiling.
    if weight_resident is None:
        resident = (w_all_bytes + act_bytes) <= budget
    else:
        resident = bool(weight_resident)

    if resident:
        IK = Ip
    else:
        IK = 128
        cap = max(128, min(i_tile, 1024, Ip))
        for cand in (1024, 512, 256, 128):
            if cand <= cap and Ip % cand == 0:
                if wr_bytes + 8 * Hp * cand + act_bytes <= budget:
                    IK = cand
                    break
    ni = Ip // IK

    xp = jnp.pad(x[0].astype(jnp.float32), ((0, Tp - T), (0, Hp - H)))
    st = jnp.pad(state.astype(jnp.float32), ((0, 0), (0, Hp - H)))

    # Packed (8, Hp) broadcast vectors: [state, ln_w, ln_b, maa_k, maa_r, 0, 0, 0].
    vecs = jnp.concatenate([st, prep["vec_params"]], axis=0)

    # Halo: raw (pre-LN) last row of the previous seq tile, per tile (row 0 unused).
    prev_rows = xp[TT - 1::TT][:nt]
    halo = jnp.concatenate(
        [jnp.zeros((1, Hp), jnp.float32), prev_rows[:nt - 1]], axis=0
    ).reshape(nt, 1, Hp)

    last_tile = (T - 1) // TT
    last_row = (T - 1) % TT

    kernel = functools.partial(_ffn_kernel, inv_h=1.0 / H, eps=1e-5,
                               last_row=last_row)

    def _run(use_single_buffer):
        def const_spec(shape, imap):
            # Constant-index-map blocks: double buffering is pure VMEM waste.
            if use_single_buffer:
                return pl.BlockSpec(shape, imap, pipeline_mode=pl.Buffered(1))
            return pl.BlockSpec(shape, imap)

        if resident:
            wk_spec = const_spec((Hp, IK), lambda t, i: (0, i))   # i is always 0
            wv_spec = const_spec((IK, Hp), lambda t, i: (i, 0))
        else:
            wk_spec = pl.BlockSpec((Hp, IK), lambda t, i: (0, i))
            wv_spec = pl.BlockSpec((IK, Hp), lambda t, i: (i, 0))

        grid_spec = pltpu.PrefetchScalarGridSpec(
            num_scalar_prefetch=0,
            grid=(nt, ni),
            in_specs=[
                pl.BlockSpec((TT, Hp), lambda t, i: (t, 0)),       # x (pre-LN)
                pl.BlockSpec((1, 1, Hp), lambda t, i: (t, 0, 0)),  # halo (raw prev row)
                const_spec((8, Hp), lambda t, i: (0, 0)),          # packed vectors
                wk_spec,                                           # Wk^T (H, I) bf16
                const_spec((Hp, Hp), lambda t, i: (0, 0)),         # Wr^T (H, H) bf16
                wv_spec,                                           # Wv^T (I, H) bf16
            ],
            out_specs=[
                pl.BlockSpec((TT, Hp), lambda t, i: (t, 0)),       # out
                pl.BlockSpec((1, 1, Hp), lambda t, i: (t, 0, 0)),  # per-tile state_out
            ],
            scratch_shapes=[
                pltpu.VMEM((TT, Hp), jnp.bfloat16),                # xk cache
                pltpu.VMEM((TT, Hp), jnp.float32),                 # receptance cache
                pltpu.VMEM((TT, Hp), jnp.float32),                 # value accumulator
            ],
        )
        return pl.pallas_call(
            kernel,
            out_shape=(
                jax.ShapeDtypeStruct((Tp, Hp), jnp.float32),
                jax.ShapeDtypeStruct((nt, 1, Hp), jnp.float32),
            ),
            grid_spec=grid_spec,
            compiler_params=pltpu.CompilerParams(
                # No cross-tile carry (halo input) -> seq axis is megacore-parallel;
                # intermediate axis is the value-matmul reduction.
                dimension_semantics=("parallel", "arbitrary"),
                vmem_limit_bytes=int(vmem_limit),
            ),
        )(xp, halo, vecs, prep["wk"], prep["wr"], prep["wv"])

    try:
        out_p, state_p = _run(True)
    except Exception:
        # Fallback for JAX versions without BlockSpec pipeline_mode / pl.Buffered(1).
        out_p, state_p = _run(False)

    # TODO(synk): for very large H (>~4096) Wr would also need an output-column grid
    # axis instead of being fully VMEM-resident.
    return out_p[:T, :H][None, ...], state_p[last_tile, :, :H]


def _reference(x, state, params, matmul_dtype=jnp.float32):
    """Pure-JAX reference mirroring the PyTorch forward (optionally bf16 matmul inputs)."""
    H = x.shape[-1]
    last_x = x
    mu = jnp.mean(x, axis=-1, keepdims=True)
    var = jnp.mean((x - mu) ** 2, axis=-1, keepdims=True)
    xn = (x - mu) / jnp.sqrt(var + 1e-5)
    xn = xn * params["ln2_w"] + params["ln2_b"]
    past = jnp.concatenate([state[:, None, :], xn[:, :-1, :]], axis=1)
    sx = past - xn
    state_out = xn[:, -1, :]
    xk = xn + sx * params["time_maa_k"].reshape(1, 1, H)
    xr = xn + sx * params["time_maa_r"].reshape(1, 1, H)

    def mm(a, w_t):
        return jnp.dot(a.astype(matmul_dtype), w_t.astype(matmul_dtype),
                       preferred_element_type=jnp.float32)

    key = jnp.maximum(mm(xk, params["key_w"].T), 0.0) ** 2
    value = mm(key, params["value_w"].T)
    receptance = jax.nn.sigmoid(mm(xr, params["receptance_w"].T))
    return receptance * value + last_x, state_out


if __name__ == "__main__":
    def make_params(key, hidden_size, intermediate_size):
        ks = jax.random.split(key, 7)
        return {
            "time_maa_k": jax.random.uniform(ks[0], (1, 1, hidden_size), jnp.float32),
            "time_maa_r": jax.random.uniform(ks[1], (1, 1, hidden_size), jnp.float32),
            "key_w": jax.random.normal(ks[2], (intermediate_size, hidden_size),
                                       jnp.float32) * 0.1,
            "receptance_w": jax.random.normal(ks[3], (hidden_size, hidden_size),
                                              jnp.float32) * 0.1,
            "value_w": jax.random.normal(ks[4], (hidden_size, intermediate_size),
                                         jnp.float32) * 0.1,
            "ln2_w": jax.random.normal(ks[5], (hidden_size,), jnp.float32) * 0.1 + 1.0,
            "ln2_b": jax.random.normal(ks[6], (hidden_size,), jnp.float32) * 0.1,
        }

    def check(out, state_out, x, state, params):
        ref_out, ref_state = _reference(x, state, params)                        # f32
        ref_out_bf, _ = _reference(x, state, params, matmul_dtype=jnp.bfloat16)  # bf16
        assert out.shape == x.shape
        assert state_out.shape == (x.shape[0], x.shape[2])
        # Loose check vs full-f32 math (bf16 matmul inputs by design), tight check vs
        # the bf16-matmul reference, near-exact check for the f32 LayerNorm state path.
        assert jnp.allclose(out, ref_out, atol=5e-2, rtol=5e-2), \
            float(jnp.max(jnp.abs(out - ref_out)))
        assert jnp.allclose(out, ref_out_bf, atol=5e-3, rtol=5e-3), \
            float(jnp.max(jnp.abs(out - ref_out_bf)))
        assert jnp.allclose(state_out, ref_state, atol=1e-4, rtol=1e-4)

    root = jax.random.PRNGKey(0)
    kp1, kx1, ks1, kp2, kx2, ks2 = jax.random.split(root, 6)

    # --- Test 1: small single-tile shapes, fully weight-resident path ---
    H1, I1, T1 = 32, 64, 8
    params1 = make_params(kp1, H1, I1)
    x1 = jax.random.normal(kx1, (1, T1, H1), jnp.float32)
    s1 = jax.random.normal(ks1, (1, H1), jnp.float32)
    prep1 = prepare_ffn_params(params1)        # one-time transpose / pad / bf16 cast
    out1, so1 = rwkv6_feed_forward(x1, s1, prep1)
    out1 = jax.block_until_ready(out1)
    so1 = jax.block_until_ready(so1)
    check(out1, so1, x1, s1, params1)

    # --- Test 2: multi seq tile (halo token shift) + intermediate-dim reduction path ---
    H2, I2, T2 = 64, 256, 40
    params2 = make_params(kp2, H2, I2)
    x2 = jax.random.normal(kx2, (1, T2, H2), jnp.float32)
    s2 = jax.random.normal(ks2, (1, H2), jnp.float32)
    prep2 = prepare_ffn_params(params2)
    out2, so2 = rwkv6_feed_forward(x2, s2, prep2, t_tile=16, i_tile=128,
                                   weight_resident=False)
    out2 = jax.block_until_ready(out2)
    so2 = jax.block_until_ready(so2)
    check(out2, so2, x2, s2, params2)

    print("KERNEL_OK")
</pallas_src>

<mosaic_0001>
module attributes {stable_mosaic.version = 11 : i64} {
  func.func @_ffn_kernel(%arg0: i32, %arg1: i32, %arg2: memref<8x128xf32, #tpu.memory_space<vmem>>, %arg3: memref<1x1x128xf32, #tpu.memory_space<vmem>>, %arg4: memref<8x128xf32, #tpu.memory_space<vmem>>, %arg5: memref<128x128xbf16, #tpu.memory_space<vmem>>, %arg6: memref<128x128xbf16, #tpu.memory_space<vmem>>, %arg7: memref<128x128xbf16, #tpu.memory_space<vmem>>, %arg8: memref<8x128xf32, #tpu.memory_space<vmem>>, %arg9: memref<1x1x128xf32, #tpu.memory_space<vmem>>, %arg10: memref<8x128xbf16, #tpu.memory_space<vmem>>, %arg11: memref<8x128xf32, #tpu.memory_space<vmem>>, %arg12: memref<8x128xf32, #tpu.memory_space<vmem>>) attributes {dimension_semantics = [#tpu.dimension_semantics<parallel>, #tpu.dimension_semantics<arbitrary>], iteration_bounds = array<i64: 1, 1>, scalar_prefetch = 0 : i64, scratch_operands = 3 : i64, tpu.core_type = #tpu.core_type<tc>, window_params = [{transform_indices = @transform_0, window_bounds = array<i64: 8, 128>}, {transform_indices = @transform_1, window_bounds = array<i64: 1, 1, 128>}, {pipeline_mode = #tpu.pipeline_mode<synchronous>, transform_indices = @transform_2, window_bounds = array<i64: 8, 128>}, {pipeline_mode = #tpu.pipeline_mode<synchronous>, transform_indices = @transform_3, window_bounds = array<i64: 128, 128>}, {pipeline_mode = #tpu.pipeline_mode<synchronous>, transform_indices = @transform_4, window_bounds = array<i64: 128, 128>}, {pipeline_mode = #tpu.pipeline_mode<synchronous>, transform_indices = @transform_5, window_bounds = array<i64: 128, 128>}, {transform_indices = @transform_6, window_bounds = array<i64: 8, 128>}, {transform_indices = @transform_7, window_bounds = array<i64: 1, 1, 128>}]} {
    %c0_i32 = arith.constant 0 : i32
    %0 = arith.cmpi eq, %arg1, %c0_i32 : i32
    %1 = arith.extui %0 : i1 to i32
    %c0_i32_0 = arith.constant 0 : i32
    %2 = arith.cmpi ne, %1, %c0_i32_0 : i32
    scf.if %2 {
      %c1 = arith.constant 1 : index
      %c0_14 = arith.constant 0 : index
      %18 = vector.load %arg4[%c1, %c0_14] : memref<8x128xf32, #tpu.memory_space<vmem>>, vector<1x128xf32>
      %c2 = arith.constant 2 : index
      %c0_15 = arith.constant 0 : index
      %19 = vector.load %arg4[%c2, %c0_15] : memref<8x128xf32, #tpu.memory_space<vmem>>, vector<1x128xf32>
      %c0_16 = arith.constant 0 : index
      %c0_17 = arith.constant 0 : index
      %20 = vector.load %arg2[%c0_16, %c0_17] : memref<8x128xf32, #tpu.memory_space<vmem>>, vector<8x128xf32>
      %cst_18 = arith.constant dense<0.000000e+00> : vector<8xf32>
      %21 = vector.multi_reduction <add>, %20, %cst_18 [1] : vector<8x128xf32> to vector<8xf32>
      %22 = vector.shape_cast %21 : vector<8xf32> to vector<8x1xf32>
      %cst_19 = arith.constant 3.125000e-02 : f32
      %23 = vector.broadcast %cst_19 : f32 to vector<8x1xf32>
      %24 = arith.mulf %22, %23 : vector<8x1xf32>
      %25 = arith.mulf %20, %20 : vector<8x128xf32>
      %cst_20 = arith.constant dense<0.000000e+00> : vector<8xf32>
      %26 = vector.multi_reduction <add>, %25, %cst_20 [1] : vector<8x128xf32> to vector<8xf32>
      %27 = vector.shape_cast %26 : vector<8xf32> to vector<8x1xf32>
      %cst_21 = arith.constant 3.125000e-02 : f32
      %28 = vector.broadcast %cst_21 : f32 to vector<8x1xf32>
      %29 = arith.mulf %27, %28 : vector<8x1xf32>
      %30 = arith.mulf %24, %24 : vector<8x1xf32>
      %31 = arith.subf %29, %30 : vector<8x1xf32>
      %cst_22 = arith.constant 0.000000e+00 : f32
      %32 = vector.broadcast %cst_22 : f32 to vector<8x1xf32>
      %33 = arith.maximumf %31, %32 : vector<8x1xf32>
      %34 = vector.broadcast %24 : vector<8x1xf32> to vector<8x128xf32>
      %35 = arith.subf %20, %34 : vector<8x128xf32>
      %cst_23 = arith.constant 9.99999974E-6 : f32
      %36 = vector.broadcast %cst_23 : f32 to vector<8x1xf32>
      %37 = arith.addf %33, %36 : vector<8x1xf32>
      %38 = math.rsqrt %37 : vector<8x1xf32>
      %39 = vector.broadcast %38 : vector<8x1xf32> to vector<8x128xf32>
      %40 = arith.mulf %35, %39 : vector<8x128xf32>
      %41 = vector.broadcast %18 : vector<1x128xf32> to vector<8x128xf32>
      %42 = arith.mulf %40, %41 : vector<8x128xf32>
      %43 = vector.broadcast %19 : vector<1x128xf32> to vector<8x128xf32>
      %44 = arith.addf %42, %43 : vector<8x128xf32>
      %c0_24 = arith.constant 0 : index
      %c0_25 = arith.constant 0 : index
      %c0_26 = arith.constant 0 : index
      %45 = vector.load %arg3[%c0_24, %c0_25, %c0_26] : memref<1x1x128xf32, #tpu.memory_space<vmem>>, vector<1x1x128xf32>
      %46 = vector.shape_cast %45 : vector<1x1x128xf32> to vector<1x128xf32>
      %cst_27 = arith.constant dense<0.000000e+00> : vector<1xf32>
      %47 = vector.multi_reduction <add>, %46, %cst_27 [1] : vector<1x128xf32> to vector<1xf32>
      %48 = vector.shape_cast %47 : vector<1xf32> to vector<1x1xf32>
      %cst_28 = arith.constant 3.125000e-02 : f32
      %49 = vector.broadcast %cst_28 : f32 to vector<1x1xf32>
      %50 = arith.mulf %48, %49 : vector<1x1xf32>
      %51 = arith.mulf %46, %46 : vector<1x128xf32>
      %cst_29 = arith.constant dense<0.000000e+00> : vector<1xf32>
      %52 = vector.multi_reduction <add>, %51, %cst_29 [1] : vector<1x128xf32> to vector<1xf32>
      %53 = vector.shape_cast %52 : vector<1xf32> to vector<1x1xf32>
      %cst_30 = arith.constant 3.125000e-02 : f32
      %54 = vector.broadcast %cst_30 : f32 to vector<1x1xf32>
      %55 = arith.mulf %53, %54 : vector<1x1xf32>
      %56 = arith.mulf %50, %50 : vector<1x1xf32>
      %57 = arith.subf %55, %56 : vector<1x1xf32>
      %cst_31 = arith.constant 0.000000e+00 : f32
      %58 = vector.broadcast %cst_31 : f32 to vector<1x1xf32>
      %59 = arith.maximumf %57, %58 : vector<1x1xf32>
      %60 = vector.broadcast %50 : vector<1x1xf32> to vector<1x128xf32>
      %61 = arith.subf %46, %60 : vector<1x128xf32>
      %cst_32 = arith.constant 9.99999974E-6 : f32
      %62 = vector.broadcast %cst_32 : f32 to vector<1x1xf32>
      %63 = arith.addf %59, %62 : vector<1x1xf32>
      %64 = math.rsqrt %63 : vector<1x1xf32>
      %65 = vector.broadcast %64 : vector<1x1xf32> to vector<1x128xf32>
      %66 = arith.mulf %61, %65 : vector<1x128xf32>
      %67 = arith.mulf %66, %18 : vector<1x128xf32>
      %68 = arith.addf %67, %19 : vector<1x128xf32>
      %c0_i32_33 = arith.constant 0 : i32
      %69 = arith.cmpi eq, %arg0, %c0_i32_33 : i32
      %c0_34 = arith.constant 0 : index
      %c0_35 = arith.constant 0 : index
      %70 = vector.load %arg4[%c0_34, %c0_35] : memref<8x128xf32, #tpu.memory_space<vmem>>, vector<1x128xf32>
      %71 = arith.select %69, %70, %68 : vector<1x128xf32>
      %c1_i32 = arith.constant 1 : i32
      %72 = tpu.dynamic_rotate %44 by %c1_i32 dim 0 : vector<8x128xf32>, i32 -> vector<8x128xf32>
      %73 = tpu.iota {dimensions = array<i32: 0>} : vector<8x128xi32>
      %c0_i32_36 = arith.constant 0 : i32
      %74 = vector.broadcast %c0_i32_36 : i32 to vector<8x128xi32>
      %75 = arith.cmpi eq, %73, %74 : vector<8x128xi32>
      %76 = vector.shape_cast %71 : vector<1x128xf32> to vector<1x128xf32>
      %77 = vector.broadcast %76 : vector<1x128xf32> to vector<8x128xf32>
      %78 = arith.select %75, %77, %72 : vector<8x128xi1>, vector<8x128xf32>
      %79 = arith.subf %78, %44 : vector<8x128xf32>
      %c3 = arith.constant 3 : index
      %c0_37 = arith.constant 0 : index
      %80 = vector.load %arg4[%c3, %c0_37] : memref<8x128xf32, #tpu.memory_space<vmem>>, vector<1x128xf32>
      %81 = vector.broadcast %80 : vector<1x128xf32> to vector<8x128xf32>
      %82 = arith.mulf %79, %81 : vector<8x128xf32>
      %83 = arith.addf %44, %82 : vector<8x128xf32>
      %c4 = arith.constant 4 : index
      %c0_38 = arith.constant 0 : index
      %84 = vector.load %arg4[%c4, %c0_38] : memref<8x128xf32, #tpu.memory_space<vmem>>, vector<1x128xf32>
      %85 = vector.broadcast %84 : vector<1x128xf32> to vector<8x128xf32>
      %86 = arith.mulf %79, %85 : vector<8x128xf32>
      %87 = arith.addf %44, %86 : vector<8x128xf32>
      %88 = arith.truncf %83 : vector<8x128xf32> to vector<8x128xbf16>
      %c0_39 = arith.constant 0 : index
      %c0_40 = arith.constant 0 : index
      %89 = vector.load %arg10[%c0_39, %c0_40] : memref<8x128xbf16, #tpu.memory_space<vmem>>, vector<8x128xbf16>
      tpu.vector_store %arg10[%c0_39, %c0_40], %88 {strides = array<i32>} : memref<8x128xbf16, #tpu.memory_space<vmem>>, vector<8x128xbf16>,
      %90 = arith.truncf %87 : vector<8x128xf32> to vector<8x128xbf16>
      %c0_41 = arith.constant 0 : index
      %c0_42 = arith.constant 0 : index
      %91 = vector.load %arg6[%c0_41, %c0_42] : memref<128x128xbf16, #tpu.memory_space<vmem>>, vector<128x128xbf16>
      %cst_43 = arith.constant dense<0.000000e+00> : vector<8x128xf32>
      %92 = tpu.matmul %90, %91, %cst_43 {dimension_numbers = #tpu.dot_dimension_numbers<[1], [0], [0], [1], [0, 0, 1, 1], [], []>} : vector<8x128xbf16>, vector<128x128xbf16>, vector<8x128xf32> -> vector<8x128xf32>
      %93 = arith.negf %92 : vector<8x128xf32>
      %94 = math.exp %93 : vector<8x128xf32>
      %cst_44 = arith.constant 1.000000e+00 : f32
      %95 = vector.broadcast %cst_44 : f32 to vector<8x128xf32>
      %96 = arith.addf %95, %94 : vector<8x128xf32>
      %97 = arith.divf %95, %96 : vector<8x128xf32>
      %c0_45 = arith.constant 0 : index
      %c0_46 = arith.constant 0 : index
      %98 = vector.load %arg11[%c0_45, %c0_46] : memref<8x128xf32, #tpu.memory_space<vmem>>, vector<8x128xf32>
      tpu.vector_store %arg11[%c0_45, %c0_46], %97 {strides = array<i32>} : memref<8x128xf32, #tpu.memory_space<vmem>>, vector<8x128xf32>,
      %cst_47 = arith.constant 0.000000e+00 : f32
      %99 = vector.broadcast %cst_47 : f32 to vector<8x128xf32>
      %c0_48 = arith.constant 0 : index
      %c0_49 = arith.constant 0 : index
      %100 = vector.load %arg12[%c0_48, %c0_49] : memref<8x128xf32, #tpu.memory_space<vmem>>, vector<8x128xf32>
      tpu.vector_store %arg12[%c0_48, %c0_49], %99 {strides = array<i32>} : memref<8x128xf32, #tpu.memory_space<vmem>>, vector<8x128xf32>,
      %101 = vector.extract_strided_slice %44 {offsets = [7, 0], sizes = [1, 128], strides = [1, 1]} : vector<8x128xf32> to vector<1x128xf32>
      %c0_50 = arith.constant 0 : index
      %c0_51 = arith.constant 0 : index
      %c0_52 = arith.constant 0 : index
      %102 = vector.load %arg9[%c0_50, %c0_51, %c0_52] : memref<1x1x128xf32, #tpu.memory_space<vmem>>, vector<1x1x128xf32>
      %103 = vector.shape_cast %102 : vector<1x1x128xf32> to vector<1x128xf32>
      %104 = vector.shape_cast %101 : vector<1x128xf32> to vector<1x1x128xf32>
      tpu.vector_store %arg9[%c0_50, %c0_51, %c0_52], %104 {strides = array<i32>} : memref<1x1x128xf32, #tpu.memory_space<vmem>>, vector<1x1x128xf32>,
    } else {
    }
    %c0 = arith.constant 0 : index
    %c0_1 = arith.constant 0 : index
    %3 = vector.load %arg10[%c0, %c0_1] : memref<8x128xbf16, #tpu.memory_space<vmem>>, vector<8x128xbf16>
    %c0_2 = arith.constant 0 : index
    %c0_3 = arith.constant 0 : index
    %4 = vector.load %arg5[%c0_2, %c0_3] : memref<128x128xbf16, #tpu.memory_space<vmem>>, vector<128x128xbf16>
    %cst = arith.constant dense<0.000000e+00> : vector<8x128xf32>
    %5 = tpu.matmul %3, %4, %cst {dimension_numbers = #tpu.dot_dimension_numbers<[1], [0], [0], [1], [0, 0, 1, 1], [], []>} : vector<8x128xbf16>, vector<128x128xbf16>, vector<8x128xf32> -> vector<8x128xf32>
    %cst_4 = arith.constant 0.000000e+00 : f32
    %6 = vector.broadcast %cst_4 : f32 to vector<8x128xf32>
    %7 = arith.maximumf %5, %6 : vector<8x128xf32>
    %8 = arith.mulf %7, %7 : vector<8x128xf32>
    %c0_5 = arith.constant 0 : index
    %c0_6 = arith.constant 0 : index
    %9 = vector.load %arg12[%c0_5, %c0_6] : memref<8x128xf32, #tpu.memory_space<vmem>>, vector<8x128xf32>
    %10 = arith.truncf %8 : vector<8x128xf32> to vector<8x128xbf16>
    %c0_7 = arith.constant 0 : index
    %c0_8 = arith.constant 0 : index
    %11 = vector.load %arg7[%c0_7, %c0_8] : memref<128x128xbf16, #tpu.memory_space<vmem>>, vector<128x128xbf16>
    %cst_9 = arith.constant dense<0.000000e+00> : vector<8x128xf32>
    %12 = tpu.matmul %10, %11, %cst_9 {dimension_numbers = #tpu.dot_dimension_numbers<[1], [0], [0], [1], [0, 0, 1, 1], [], []>} : vector<8x128xbf16>, vector<128x128xbf16>, vector<8x128xf32> -> vector<8x128xf32>
    %13 = arith.addf %9, %12 : vector<8x128xf32>
    %c0_10 = arith.constant 0 : index
    %c0_11 = arith.constant 0 : index
    %14 = vector.load %arg12[%c0_10, %c0_11] : memref<8x128xf32, #tpu.memory_space<vmem>>, vector<8x128xf32>
    tpu.vector_store %arg12[%c0_10, %c0_11], %13 {strides = array<i32>} : memref<8x128xf32, #tpu.memory_space<vmem>>, vector<8x128xf32>,
    %c0_i32_12 = arith.constant 0 : i32
    %15 = arith.cmpi eq, %arg1, %c0_i32_12 : i32
    %16 = arith.extui %15 : i1 to i32
    %c0_i32_13 = arith.constant 0 : i32
    %17 = arith.cmpi ne, %16, %c0_i32_13 : i32
    scf.if %17 {
      %c0_14 = arith.constant 0 : index
      %c0_15 = arith.constant 0 : index
      %18 = vector.load %arg11[%c0_14, %c0_15] : memref<8x128xf32, #tpu.memory_space<vmem>>, vector<8x128xf32>
      %c0_16 = arith.constant 0 : index
      %c0_17 = arith.constant 0 : index
      %19 = vector.load %arg12[%c0_16, %c0_17] : memref<8x128xf32, #tpu.memory_space<vmem>>, vector<8x128xf32>
      %20 = arith.mulf %18, %19 : vector<8x128xf32>
      %c0_18 = arith.constant 0 : index
      %c0_19 = arith.constant 0 : index
      %21 = vector.load %arg2[%c0_18, %c0_19] : memref<8x128xf32, #tpu.memory_space<vmem>>, vector<8x128xf32>
      %22 = arith.addf %20, %21 : vector<8x128xf32>
      %c0_20 = arith.constant 0 : index
      %c0_21 = arith.constant 0 : index
      %23 = vector.load %arg8[%c0_20, %c0_21] : memref<8x128xf32, #tpu.memory_space<vmem>>, vector<8x128xf32>
      tpu.vector_store %arg8[%c0_20, %c0_21], %22 {strides = array<i32>} : memref<8x128xf32, #tpu.memory_space<vmem>>, vector<8x128xf32>,
    } else {
    }
    return
  }
  func.func @transform_0(%arg0: i32, %arg1: i32) -> (i32, i32) {
    %c0_i32 = arith.constant 0 : i32
    %c0_i32_0 = arith.constant 0 : i32
    return %arg0, %c0_i32 : i32, i32
  }
  func.func @transform_1(%arg0: i32, %arg1: i32) -> (i32, i32, i32) {
    %c0_i32 = arith.constant 0 : i32
    %c0_i32_0 = arith.constant 0 : i32
    %c0_i32_1 = arith.constant 0 : i32
    return %arg0, %c0_i32, %c0_i32_0 : i32, i32, i32
  }
  func.func @transform_2(%arg0: i32, %arg1: i32) -> (i32, i32) {
    %c0_i32 = arith.constant 0 : i32
    %c0_i32_0 = arith.constant 0 : i32
    %c0_i32_1 = arith.constant 0 : i32
    return %c0_i32, %c0_i32_0 : i32, i32
  }
  func.func @transform_3(%arg0: i32, %arg1: i32) -> (i32, i32) {
    %c0_i32 = arith.constant 0 : i32
    %c0_i32_0 = arith.constant 0 : i32
    return %c0_i32, %arg1 : i32, i32
  }
  func.func @transform_4(%arg0: i32, %arg1: i32) -> (i32, i32) {
    %c0_i32 = arith.constant 0 : i32
    %c0_i32_0 = arith.constant 0 : i32
    %c0_i32_1 = arith.constant 0 : i32
    return %c0_i32, %c0_i32_0 : i32, i32
  }
  func.func @transform_5(%arg0: i32, %arg1: i32) -> (i32, i32) {
    %c0_i32 = arith.constant 0 : i32
    %c0_i32_0 = arith.constant 0 : i32
    return %arg1, %c0_i32 : i32, i32
  }
  func.func @transform_6(%arg0: i32, %arg1: i32) -> (i32, i32) {
    %c0_i32 = arith.constant 0 : i32
    %c0_i32_0 = arith.constant 0 : i32
    return %arg0, %c0_i32 : i32, i32
  }
  func.func @transform_7(%arg0: i32, %arg1: i32) -> (i32, i32, i32) {
    %c0_i32 = arith.constant 0 : i32
    %c0_i32_0 = arith.constant 0 : i32
    %c0_i32_1 = arith.constant 0 : i32
    return %arg0, %c0_i32, %c0_i32_0 : i32, i32, i32
  }
}

module attributes {stable_mosaic.version = 11 : i64} {
  func.func @_ffn_kernel(%arg0: i32, %arg1: i32, %arg2: memref<8x128xf32, #tpu.memory_space<vmem>>, %arg3: memref<1x1x128xf32, #tpu.memory_space<vmem>>, %arg4: memref<8x128xf32, #tpu.memory_space<vmem>>, %arg5: memref<128x128xbf16, #tpu.memory_space<vmem>>, %arg6: memref<128x128xbf16, #tpu.memory_space<vmem>>, %arg7: memref<128x128xbf16, #tpu.memory_space<vmem>>, %arg8: memref<8x128xf32, #tpu.memory_space<vmem>>, %arg9: memref<1x1x128xf32, #tpu.memory_space<vmem>>, %arg10: memref<8x128xbf16, #tpu.memory_space<vmem>>, %arg11: memref<8x128xf32, #tpu.memory_space<vmem>>, %arg12: memref<8x128xf32, #tpu.memory_space<vmem>>) attributes {dimension_semantics = [#tpu.dimension_semantics<parallel>, #tpu.dimension_semantics<arbitrary>], iteration_bounds = array<i64: 1, 1>, scalar_prefetch = 0 : i64, scratch_operands = 3 : i64, tpu.core_type = #tpu.core_type<tc>, window_params = [{transform_indices = @transform_0, window_bounds = array<i64: 8, 128>}, {transform_indices = @transform_1, window_bounds = array<i64: 1, 1, 128>}, {pipeline_mode = #tpu.pipeline_mode<synchronous>, transform_indices = @transform_2, window_bounds = array<i64: 8, 128>}, {transform_indices = @transform_3, window_bounds = array<i64: 128, 128>}, {pipeline_mode = #tpu.pipeline_mode<synchronous>, transform_indices = @transform_4, window_bounds = array<i64: 128, 128>}, {transform_indices = @transform_5, window_bounds = array<i64: 128, 128>}, {transform_indices = @transform_6, window_bounds = array<i64: 8, 128>}, {transform_indices = @transform_7, window_bounds = array<i64: 1, 1, 128>}]} {
    %c0_i32 = arith.constant 0 : i32
    %0 = arith.cmpi eq, %arg1, %c0_i32 : i32
    %1 = arith.extui %0 : i1 to i32
    %c0_i32_0 = arith.constant 0 : i32
    %2 = arith.cmpi ne, %1, %c0_i32_0 : i32
    scf.if %2 {
      %c1 = arith.constant 1 : index
      %c0_14 = arith.constant 0 : index
      %18 = vector.load %arg4[%c1, %c0_14] : memref<8x128xf32, #tpu.memory_space<vmem>>, vector<1x128xf32>
      %c2 = arith.constant 2 : index
      %c0_15 = arith.constant 0 : index
      %19 = vector.load %arg4[%c2, %c0_15] : memref<8x128xf32, #tpu.memory_space<vmem>>, vector<1x128xf32>
      %c0_16 = arith.constant 0 : index
      %c0_17 = arith.constant 0 : index
      %20 = vector.load %arg2[%c0_16, %c0_17] : memref<8x128xf32, #tpu.memory_space<vmem>>, vector<8x128xf32>
      %cst_18 = arith.constant dense<0.000000e+00> : vector<8xf32>
      %21 = vector.multi_reduction <add>, %20, %cst_18 [1] : vector<8x128xf32> to vector<8xf32>
      %22 = vector.shape_cast %21 : vector<8xf32> to vector<8x1xf32>
      %cst_19 = arith.constant 3.125000e-02 : f32
      %23 = vector.broadcast %cst_19 : f32 to vector<8x1xf32>
      %24 = arith.mulf %22, %23 : vector<8x1xf32>
      %25 = arith.mulf %20, %20 : vector<8x128xf32>
      %cst_20 = arith.constant dense<0.000000e+00> : vector<8xf32>
      %26 = vector.multi_reduction <add>, %25, %cst_20 [1] : vector<8x128xf32> to vector<8xf32>
      %27 = vector.shape_cast %26 : vector<8xf32> to vector<8x1xf32>
      %cst_21 = arith.constant 3.125000e-02 : f32
      %28 = vector.broadcast %cst_21 : f32 to vector<8x1xf32>
      %29 = arith.mulf %27, %28 : vector<8x1xf32>
      %30 = arith.mulf %24, %24 : vector<8x1xf32>
      %31 = arith.subf %29, %30 : vector<8x1xf32>
      %cst_22 = arith.constant 0.000000e+00 : f32
      %32 = vector.broadcast %cst_22 : f32 to vector<8x1xf32>
      %33 = arith.maximumf %31, %32 : vector<8x1xf32>
      %34 = vector.broadcast %24 : vector<8x1xf32> to vector<8x128xf32>
      %35 = arith.subf %20, %34 : vector<8x128xf32>
      %cst_23 = arith.constant 9.99999974E-6 : f32
      %36 = vector.broadcast %cst_23 : f32 to vector<8x1xf32>
      %37 = arith.addf %33, %36 : vector<8x1xf32>
      %38 = math.rsqrt %37 : vector<8x1xf32>
      %39 = vector.broadcast %38 : vector<8x1xf32> to vector<8x128xf32>
      %40 = arith.mulf %35, %39 : vector<8x128xf32>
      %41 = vector.broadcast %18 : vector<1x128xf32> to vector<8x128xf32>
      %42 = arith.mulf %40, %41 : vector<8x128xf32>
      %43 = vector.broadcast %19 : vector<1x128xf32> to vector<8x128xf32>
      %44 = arith.addf %42, %43 : vector<8x128xf32>
      %c0_24 = arith.constant 0 : index
      %c0_25 = arith.constant 0 : index
      %c0_26 = arith.constant 0 : index
      %45 = vector.load %arg3[%c0_24, %c0_25, %c0_26] : memref<1x1x128xf32, #tpu.memory_space<vmem>>, vector<1x1x128xf32>
      %46 = vector.shape_cast %45 : vector<1x1x128xf32> to vector<1x128xf32>
      %cst_27 = arith.constant dense<0.000000e+00> : vector<1xf32>
      %47 = vector.multi_reduction <add>, %46, %cst_27 [1] : vector<1x128xf32> to vector<1xf32>
      %48 = vector.shape_cast %47 : vector<1xf32> to vector<1x1xf32>
      %cst_28 = arith.constant 3.125000e-02 : f32
      %49 = vector.broadcast %cst_28 : f32 to vector<1x1xf32>
      %50 = arith.mulf %48, %49 : vector<1x1xf32>
      %51 = arith.mulf %46, %46 : vector<1x128xf32>
      %cst_29 = arith.constant dense<0.000000e+00> : vector<1xf32>
      %52 = vector.multi_reduction <add>, %51, %cst_29 [1] : vector<1x128xf32> to vector<1xf32>
      %53 = vector.shape_cast %52 : vector<1xf32> to vector<1x1xf32>
      %cst_30 = arith.constant 3.125000e-02 : f32
      %54 = vector.broadcast %cst_30 : f32 to vector<1x1xf32>
      %55 = arith.mulf %53, %54 : vector<1x1xf32>
      %56 = arith.mulf %50, %50 : vector<1x1xf32>
      %57 = arith.subf %55, %56 : vector<1x1xf32>
      %cst_31 = arith.constant 0.000000e+00 : f32
      %58 = vector.broadcast %cst_31 : f32 to vector<1x1xf32>
      %59 = arith.maximumf %57, %58 : vector<1x1xf32>
      %60 = vector.broadcast %50 : vector<1x1xf32> to vector<1x128xf32>
      %61 = arith.subf %46, %60 : vector<1x128xf32>
      %cst_32 = arith.constant 9.99999974E-6 : f32
      %62 = vector.broadcast %cst_32 : f32 to vector<1x1xf32>
      %63 = arith.addf %59, %62 : vector<1x1xf32>
      %64 = math.rsqrt %63 : vector<1x1xf32>
      %65 = vector.broadcast %64 : vector<1x1xf32> to vector<1x128xf32>
      %66 = arith.mulf %61, %65 : vector<1x128xf32>
      %67 = arith.mulf %66, %18 : vector<1x128xf32>
      %68 = arith.addf %67, %19 : vector<1x128xf32>
      %c0_i32_33 = arith.constant 0 : i32
      %69 = arith.cmpi eq, %arg0, %c0_i32_33 : i32
      %c0_34 = arith.constant 0 : index
      %c0_35 = arith.constant 0 : index
      %70 = vector.load %arg4[%c0_34, %c0_35] : memref<8x128xf32, #tpu.memory_space<vmem>>, vector<1x128xf32>
      %71 = arith.select %69, %70, %68 : vector<1x128xf32>
      %c1_i32 = arith.constant 1 : i32
      %72 = tpu.dynamic_rotate %44 by %c1_i32 dim 0 : vector<8x128xf32>, i32 -> vector<8x128xf32>
      %73 = tpu.iota {dimensions = array<i32: 0>} : vector<8x128xi32>
      %c0_i32_36 = arith.constant 0 : i32
      %74 = vector.broadcast %c0_i32_36 : i32 to vector<8x128xi32>
      %75 = arith.cmpi eq, %73, %74 : vector<8x128xi32>
      %76 = vector.shape_cast %71 : vector<1x128xf32> to vector<1x128xf32>
      %77 = vector.broadcast %76 : vector<1x128xf32> to vector<8x128xf32>
      %78 = arith.select %75, %77, %72 : vector<8x128xi1>, vector<8x128xf32>
      %79 = arith.subf %78, %44 : vector<8x128xf32>
      %c3 = arith.constant 3 : index
      %c0_37 = arith.constant 0 : index
      %80 = vector.load %arg4[%c3, %c0_37] : memref<8x128xf32, #tpu.memory_space<vmem>>, vector<1x128xf32>
      %81 = vector.broadcast %80 : vector<1x128xf32> to vector<8x128xf32>
      %82 = arith.mulf %79, %81 : vector<8x128xf32>
      %83 = arith.addf %44, %82 : vector<8x128xf32>
      %c4 = arith.constant 4 : index
      %c0_38 = arith.constant 0 : index
      %84 = vector.load %arg4[%c4, %c0_38] : memref<8x128xf32, #tpu.memory_space<vmem>>, vector<1x128xf32>
      %85 = vector.broadcast %84 : vector<1x128xf32> to vector<8x128xf32>
      %86 = arith.mulf %79, %85 : vector<8x128xf32>
      %87 = arith.addf %44, %86 : vector<8x128xf32>
      %88 = arith.truncf %83 : vector<8x128xf32> to vector<8x128xbf16>
      %c0_39 = arith.constant 0 : index
      %c0_40 = arith.constant 0 : index
      %89 = vector.load %arg10[%c0_39, %c0_40] : memref<8x128xbf16, #tpu.memory_space<vmem>>, vector<8x128xbf16>
      tpu.vector_store %arg10[%c0_39, %c0_40], %88 {strides = array<i32>} : memref<8x128xbf16, #tpu.memory_space<vmem>>, vector<8x128xbf16>,
      %90 = arith.truncf %87 : vector<8x128xf32> to vector<8x128xbf16>
      %c0_41 = arith.constant 0 : index
      %c0_42 = arith.constant 0 : index
      %91 = vector.load %arg6[%c0_41, %c0_42] : memref<128x128xbf16, #tpu.memory_space<vmem>>, vector<128x128xbf16>
      %cst_43 = arith.constant dense<0.000000e+00> : vector<8x128xf32>
      %92 = tpu.matmul %90, %91, %cst_43 {dimension_numbers = #tpu.dot_dimension_numbers<[1], [0], [0], [1], [0, 0, 1, 1], [], []>} : vector<8x128xbf16>, vector<128x128xbf16>, vector<8x128xf32> -> vector<8x128xf32>
      %93 = arith.negf %92 : vector<8x128xf32>
      %94 = math.exp %93 : vector<8x128xf32>
      %cst_44 = arith.constant 1.000000e+00 : f32
      %95 = vector.broadcast %cst_44 : f32 to vector<8x128xf32>
      %96 = arith.addf %95, %94 : vector<8x128xf32>
      %97 = arith.divf %95, %96 : vector<8x128xf32>
      %c0_45 = arith.constant 0 : index
      %c0_46 = arith.constant 0 : index
      %98 = vector.load %arg11[%c0_45, %c0_46] : memref<8x128xf32, #tpu.memory_space<vmem>>, vector<8x128xf32>
      tpu.vector_store %arg11[%c0_45, %c0_46], %97 {strides = array<i32>} : memref<8x128xf32, #tpu.memory_space<vmem>>, vector<8x128xf32>,
      %cst_47 = arith.constant 0.000000e+00 : f32
      %99 = vector.broadcast %cst_47 : f32 to vector<8x128xf32>
      %c0_48 = arith.constant 0 : index
      %c0_49 = arith.constant 0 : index
      %100 = vector.load %arg12[%c0_48, %c0_49] : memref<8x128xf32, #tpu.memory_space<vmem>>, vector<8x128xf32>
      tpu.vector_store %arg12[%c0_48, %c0_49], %99 {strides = array<i32>} : memref<8x128xf32, #tpu.memory_space<vmem>>, vector<8x128xf32>,
      %101 = vector.extract_strided_slice %44 {offsets = [7, 0], sizes = [1, 128], strides = [1, 1]} : vector<8x128xf32> to vector<1x128xf32>
      %c0_50 = arith.constant 0 : index
      %c0_51 = arith.constant 0 : index
      %c0_52 = arith.constant 0 : index
      %102 = vector.load %arg9[%c0_50, %c0_51, %c0_52] : memref<1x1x128xf32, #tpu.memory_space<vmem>>, vector<1x1x128xf32>
      %103 = vector.shape_cast %102 : vector<1x1x128xf32> to vector<1x128xf32>
      %104 = vector.shape_cast %101 : vector<1x128xf32> to vector<1x1x128xf32>
      tpu.vector_store %arg9[%c0_50, %c0_51, %c0_52], %104 {strides = array<i32>} : memref<1x1x128xf32, #tpu.memory_space<vmem>>, vector<1x1x128xf32>,
    } else {
    }
    %c0 = arith.constant 0 : index
    %c0_1 = arith.constant 0 : index
    %3 = vector.load %arg10[%c0, %c0_1] : memref<8x128xbf16, #tpu.memory_space<vmem>>, vector<8x128xbf16>
    %c0_2 = arith.constant 0 : index
    %c0_3 = arith.constant 0 : index
    %4 = vector.load %arg5[%c0_2, %c0_3] : memref<128x128xbf16, #tpu.memory_space<vmem>>, vector<128x128xbf16>
    %cst = arith.constant dense<0.000000e+00> : vector<8x128xf32>
    %5 = tpu.matmul %3, %4, %cst {dimension_numbers = #tpu.dot_dimension_numbers<[1], [0], [0], [1], [0, 0, 1, 1], [], []>} : vector<8x128xbf16>, vector<128x128xbf16>, vector<8x128xf32> -> vector<8x128xf32>
    %cst_4 = arith.constant 0.000000e+00 : f32
    %6 = vector.broadcast %cst_4 : f32 to vector<8x128xf32>
    %7 = arith.maximumf %5, %6 : vector<8x128xf32>
    %8 = arith.mulf %7, %7 : vector<8x128xf32>
    %c0_5 = arith.constant 0 : index
    %c0_6 = arith.constant 0 : index
    %9 = vector.load %arg12[%c0_5, %c0_6] : memref<8x128xf32, #tpu.memory_space<vmem>>, vector<8x128xf32>
    %10 = arith.truncf %8 : vector<8x128xf32> to vector<8x128xbf16>
    %c0_7 = arith.constant 0 : index
    %c0_8 = arith.constant 0 : index
    %11 = vector.load %arg7[%c0_7, %c0_8] : memref<128x128xbf16, #tpu.memory_space<vmem>>, vector<128x128xbf16>
    %cst_9 = arith.constant dense<0.000000e+00> : vector<8x128xf32>
    %12 = tpu.matmul %10, %11, %cst_9 {dimension_numbers = #tpu.dot_dimension_numbers<[1], [0], [0], [1], [0, 0, 1, 1], [], []>} : vector<8x128xbf16>, vector<128x128xbf16>, vector<8x128xf32> -> vector<8x128xf32>
    %13 = arith.addf %9, %12 : vector<8x128xf32>
    %c0_10 = arith.constant 0 : index
    %c0_11 = arith.constant 0 : index
    %14 = vector.load %arg12[%c0_10, %c0_11] : memref<8x128xf32, #tpu.memory_space<vmem>>, vector<8x128xf32>
    tpu.vector_store %arg12[%c0_10, %c0_11], %13 {strides = array<i32>} : memref<8x128xf32, #tpu.memory_space<vmem>>, vector<8x128xf32>,
    %c0_i32_12 = arith.constant 0 : i32
    %15 = arith.cmpi eq, %arg1, %c0_i32_12 : i32
    %16 = arith.extui %15 : i1 to i32
    %c0_i32_13 = arith.constant 0 : i32
    %17 = arith.cmpi ne, %16, %c0_i32_13 : i32
    scf.if %17 {
      %c0_14 = arith.constant 0 : index
      %c0_15 = arith.constant 0 : index
      %18 = vector.load %arg11[%c0_14, %c0_15] : memref<8x128xf32, #tpu.memory_space<vmem>>, vector<8x128xf32>
      %c0_16 = arith.constant 0 : index
      %c0_17 = arith.constant 0 : index
      %19 = vector.load %arg12[%c0_16, %c0_17] : memref<8x128xf32, #tpu.memory_space<vmem>>, vector<8x128xf32>
      %20 = arith.mulf %18, %19 : vector<8x128xf32>
      %c0_18 = arith.constant 0 : index
      %c0_19 = arith.constant 0 : index
      %21 = vector.load %arg2[%c0_18, %c0_19] : memref<8x128xf32, #tpu.memory_space<vmem>>, vector<8x128xf32>
      %22 = arith.addf %20, %21 : vector<8x128xf32>
      %c0_20 = arith.constant 0 : index
      %c0_21 = arith.constant 0 : index
      %23 = vector.load %arg8[%c0_20, %c0_21] : memref<8x128xf32, #tpu.memory_space<vmem>>, vector<8x128xf32>
      tpu.vector_store %arg8[%c0_20, %c0_21], %22 {strides = array<i32>} : memref<8x128xf32, #tpu.memory_space<vmem>>, vector<8x128xf32>,
    } else {
    }
    return
  }
  func.func @transform_0(%arg0: i32, %arg1: i32) -> (i32, i32) {
    %c0_i32 = arith.constant 0 : i32
    %c0_i32_0 = arith.constant 0 : i32
    return %arg0, %c0_i32 : i32, i32
  }
  func.func @transform_1(%arg0: i32, %arg1: i32) -> (i32, i32, i32) {
    %c0_i32 = arith.constant 0 : i32
    %c0_i32_0 = arith.constant 0 : i32
    %c0_i32_1 = arith.constant 0 : i32
    return %arg0, %c0_i32, %c0_i32_0 : i32, i32, i32
  }
  func.func @transform_2(%arg0: i32, %arg1: i32) -> (i32, i32) {
    %c0_i32 = arith.constant 0 : i32
    %c0_i32_0 = arith.constant 0 : i32
    %c0_i32_1 = arith.constant 0 : i32
    return %c0_i32, %c0_i32_0 : i32, i32
  }
  func.func @transform_3(%arg0: i32, %arg1: i32) -> (i32, i32) {
    %c0_i32 = arith.constant 0 : i32
    %c0_i32_0 = arith.constant 0 : i32
    return %c0_i32, %arg1 : i32, i32
  }
  func.func @transform_4(%arg0: i32, %arg1: i32) -> (i32, i32) {
    %c0_i32 = arith.constant 0 : i32
    %c0_i32_0 = arith.constant 0 : i32
    %c0_i32_1 = arith.constant 0 : i32
    return %c0_i32, %c0_i32_0 : i32, i32
  }
  func.func @transform_5(%arg0: i32, %arg1: i32) -> (i32, i32) {
    %c0_i32 = arith.constant 0 : i32
    %c0_i32_0 = arith.constant 0 : i32
    return %arg1, %c0_i32 : i32, i32
  }
  func.func @transform_6(%arg0: i32, %arg1: i32) -> (i32, i32) {
    %c0_i32 = arith.constant 0 : i32
    %c0_i32_0 = arith.constant 0 : i32
    return %arg0, %c0_i32 : i32, i32
  }
  func.func @transform_7(%arg0: i32, %arg1: i32) -> (i32, i32, i32) {
    %c0_i32 = arith.constant 0 : i32
    %c0_i32_0 = arith.constant 0 : i32
    %c0_i32_1 = arith.constant 0 : i32
    return %arg0, %c0_i32, %c0_i32_0 : i32, i32, i32
  }
}

</mosaic_0001>

<llo_original>
// kernel: tpu_custom_call.1
$region0: #{tpu_custom_call.1}
  #allocation0 [shape = 'u32[]', space=smem, size = 0x4, offset = 0x4, fixed_abs, tag = 'smem constant byte address 0x4 - core index']
  #allocation1 [shape = 'u32[144,128]{1,0:T(1,128)}', space=vmem, size = 0x12000, scoped, tag = 'internal scratch']
  #allocation2 [shape = 'bf16[8,128]{1,0:T(8,128)(2,1)}', space=vmem, size = 0x800, scoped, tag = 'scratch operand']
  #allocation3 [shape = 'f32[8,128]{1,0:T(8,128)}', space=vmem, size = 0x1000, scoped, tag = 'scratch operand']
  #allocation4 [shape = 'f32[8,128]{1,0:T(8,128)}', space=vmem, size = 0x1000, scoped, tag = 'scratch operand']
  %s0 = inlined_call_operand.hbm [shape: f32[8,128], index: 0, kind: input, shape index: {}]
  %s1 = inlined_call_operand.vmem [shape: f32[1,1,128], index: 1, kind: input, shape index: {}]
  %s2 = inlined_call_operand.hbm [shape: f32[8,128], index: 2, kind: input, shape index: {}]
  %s3 = inlined_call_operand.hbm [shape: bf16[128,128], index: 3, kind: input, shape index: {}]
  %s4 = inlined_call_operand.hbm [shape: bf16[128,128], index: 4, kind: input, shape index: {}]
  %s5 = inlined_call_operand.hbm [shape: bf16[128,128], index: 5, kind: input, shape index: {}]
  %s6 = inlined_call_operand.hbm [shape: f32[8,128], index: 6, kind: output, shape index: {0}]
  %s7 = inlined_call_operand.hbm [shape: f32[1,1,128], index: 7, kind: output, shape index: {1}]
  %8 = xla_tuple %s6, %s7
  %s9 = sld [smem:[#allocation0]]
  $region70: #{tpu_custom_call.1} parent=0
    _
  %s11 = ssub.s32 1, %s9
  %s12 = scalar_select 0, %s11, %s9
  $region1: #{tpu_custom_call.1} parent=0
    #allocation5 [shape = 'u8[4096]{0}', space=vmem, size = 0x1000, scoped, tag = 'input window, operand 0, single buffered']
    #allocation6 [shape = 's32[1]{0}', space=sflag, size = 0x4, scoped, tag = 'scoped memory for tpu_custom_call.1']
    #allocation7 [shape = 's32[1]{0}', space=sflag, size = 0x4, scoped, tag = 'scoped memory for tpu_custom_call.1']
    #allocation8 [shape = 'u8[4096]{0}', space=vmem, size = 0x1000, scoped, tag = 'input window, operand 2, single buffered']
    #allocation9 [shape = 's32[1]{0}', space=sflag, size = 0x4, scoped, tag = 'scoped memory for tpu_custom_call.1']
    #allocation10 [shape = 'u8[32768]{0}', space=vmem, size = 0x8000, scoped, tag = 'input window, operand 3, single buffered']
    #allocation11 [shape = 'u8[32768]{0}', space=vmem, size = 0x8000, scoped, tag = 'input window, operand 4, single buffered']
    #allocation12 [shape = 's32[1]{0}', space=sflag, size = 0x4, scoped, tag = 'scoped memory for tpu_custom_call.1']
    #allocation13 [shape = 'u8[32768]{0}', space=vmem, size = 0x8000, scoped, tag = 'input window, operand 5, single buffered']
    #allocation14 [shape = 'u8[4096]{0}', space=vmem, size = 0x1000, scoped, tag = 'output window, operand 0, single buffered']
    #allocation15 [shape = 'u8[512]{0}', space=vmem, size = 0x400, scoped, tag = 'output window, operand 1, single buffered']
    #allocation16 [shape = 's32[1]{0}', space=sflag, size = 0x4, scoped, tag = 'scoped memory for tpu_custom_call.1']
    %13 = vsyncpa [#allocation6], 0
    %14 = vsyncpa [#allocation9], 0
    %15 = vsyncpa [#allocation12], 0
    %16 = vsyncpa [#allocation7], 0
    %17 = vsyncpa [#allocation16], 0
    // Predicated region
    $region2: #{tpu_custom_call.1} parent=1 // pred_check
      _
    $region3: #{tpu_custom_call.1} parent=1 // pred_check_branch
      %19 = sbr.rel (0) target = $region5
    $region4: #{tpu_custom_call.1} parent=1 // pred_region
      %s21 = ssub.s32 128, 128
      %22 = vsyncadd [#allocation6], %s21
      %s24 = sshll.u32 [#allocation5], 4
      %s25 = int_to_ptr.vmem [resolvable:$true] %s24
      %27 = dma.hbm_to_vmem [thread:$0]  %s0, 128, %s25, [#allocation6]
    $region5: #{tpu_custom_call.1} parent=1 // pred_fallthru
      _
    // Predicated region
    $region6: #{tpu_custom_call.1} parent=1 // pred_check
      _
    $region7: #{tpu_custom_call.1} parent=1 // pred_check_branch
      %29 = sbr.rel (0) target = $region9
    $region8: #{tpu_custom_call.1} parent=1 // pred_region
      _
    $region9: #{tpu_custom_call.1} parent=1 // pred_fallthru
      _
    // Predicated region
    $region10: #{tpu_custom_call.1} parent=1 // pred_check
      _
    $region11: #{tpu_custom_call.1} parent=1 // pred_check_branch
      %31 = sbr.rel (0) target = $region13
    $region12: #{tpu_custom_call.1} parent=1 // pred_region
      %s33 = ssub.s32 128, 128
      %34 = vsyncadd [#allocation9], %s33
      %s36 = sshll.u32 [#allocation8], 4
      %s37 = int_to_ptr.vmem [resolvable:$true] %s36
      %39 = dma.hbm_to_vmem [thread:$0]  %s2, 128, %s37, [#allocation9]
    $region13: #{tpu_custom_call.1} parent=1 // pred_fallthru
      _
    // Predicated region
    $region14: #{tpu_custom_call.1} parent=1 // pred_check
      _
    $region15: #{tpu_custom_call.1} parent=1 // pred_check_branch
      %41 = sbr.rel (0) target = $region17
    $region16: #{tpu_custom_call.1} parent=1 // pred_region
      %s43 = ssub.s32 1024, 1024
      %44 = vsyncadd [#allocation9], %s43
      %s45 = sshll.u32 [#allocation10], 4
      %s46 = int_to_ptr.vmem [resolvable:$true] %s45
      %51 = dma.hbm_to_vmem [thread:$0]  %s3, 1024, %s46, [#allocation9], 64, 64, 4
    $region17: #{tpu_custom_call.1} parent=1 // pred_fallthru
      _
    // Predicated region
    $region18: #{tpu_custom_call.1} parent=1 // pred_check
      _
    $region19: #{tpu_custom_call.1} parent=1 // pred_check_branch
      %53 = sbr.rel (0) target = $region21
    $region20: #{tpu_custom_call.1} parent=1 // pred_region
      %s55 = ssub.s32 1024, 1024
      %56 = vsyncadd [#allocation12], %s55
      %s57 = sshll.u32 [#allocation11], 4
      %s58 = int_to_ptr.vmem [resolvable:$true] %s57
      %63 = dma.hbm_to_vmem [thread:$0]  %s4, 1024, %s58, [#allocation12], 64, 64, 4
    $region21: #{tpu_custom_call.1} parent=1 // pred_fallthru
      _
    // Predicated region
    $region22: #{tpu_custom_call.1} parent=1 // pred_check
      _
    $region23: #{tpu_custom_call.1} parent=1 // pred_check_branch
      %65 = sbr.rel (0) target = $region25
    $region24: #{tpu_custom_call.1} parent=1 // pred_region
      %s67 = ssub.s32 1024, 1024
      %68 = vsyncadd [#allocation12], %s67
      %s69 = sshll.u32 [#allocation13], 4
      %s70 = int_to_ptr.vmem [resolvable:$true] %s69
      %75 = dma.hbm_to_vmem [thread:$0]  %s5, 1024, %s70, [#allocation12], 64, 64, 4
    $region25: #{tpu_custom_call.1} parent=1 // pred_fallthru
      _
    // Predicated region
    $region26: #{tpu_custom_call.1} parent=1 // pred_check
      _
    $region27: #{tpu_custom_call.1} parent=1 // pred_check_branch
      %77 = sbr.rel (0) target = $region29
    $region28: #{tpu_custom_call.1} parent=1 // pred_region
      %78 = dma.done [#allocation6], 128
    $region29: #{tpu_custom_call.1} parent=1 // pred_fallthru
      _
    // Predicated region
    $region30: #{tpu_custom_call.1} parent=1 // pred_check
      _
    $region31: #{tpu_custom_call.1} parent=1 // pred_check_branch
      %80 = sbr.rel (0) target = $region33
    $region32: #{tpu_custom_call.1} parent=1 // pred_region
      %81 = dma.done [#allocation9], 128
    $region33: #{tpu_custom_call.1} parent=1 // pred_fallthru
      _
    // Predicated region
    $region34: #{tpu_custom_call.1} parent=1 // pred_check
      _
    $region35: #{tpu_custom_call.1} parent=1 // pred_check_branch
      %83 = sbr.rel (0) target = $region37
    $region36: #{tpu_custom_call.1} parent=1 // pred_region
      %84 = dma.done [#allocation9], 1024
    $region37: #{tpu_custom_call.1} parent=1 // pred_fallthru
      _
    // Predicated region
    $region38: #{tpu_custom_call.1} parent=1 // pred_check
      _
    $region39: #{tpu_custom_call.1} parent=1 // pred_check_branch
      %86 = sbr.rel (0) target = $region41
    $region40: #{tpu_custom_call.1} parent=1 // pred_region
      %87 = dma.done [#allocation12], 1024
    $region41: #{tpu_custom_call.1} parent=1 // pred_fallthru
      _
    // Predicated region
    $region42: #{tpu_custom_call.1} parent=1 // pred_check
      _
    $region43: #{tpu_custom_call.1} parent=1 // pred_check_branch
      %89 = sbr.rel (0) target = $region45
    $region44: #{tpu_custom_call.1} parent=1 // pred_region
      %90 = dma.done [#allocation12], 1024
    $region45: #{tpu_custom_call.1} parent=1 // pred_fallthru
      _
    %p92 = scmp.eq.s32.totalorder 0, 0
    // Predicated region
    $region46: #{tpu_custom_call.1} parent=1 // pred_check
      %p93 = pneg %p92
    $region47: #{tpu_custom_call.1} parent=1 // pred_check_branch
      %95 = sbr.rel (%p93) target = $region49
    $region48: #{tpu_custom_call.1} parent=1 // pred_region
      %v96 = vld [vmem:[#allocation8 + $0x1] sm:$0x1]
      %v97 = vld [vmem:[#allocation8 + $0x2] sm:$0x1]
      %v98 = vld [vmem:[#allocation5] sm:$0xff]
      %99 = vadd.xlane.f32.xlu0 %v98
      %v100 = vpop.xlane.xlu0 %99
      %v101 = vmul.f32 %v100, 0.03125
      %v102 = vmul.f32 %v98, %v98
      %103 = vadd.xlane.f32.xlu0 %v102
      %v104 = vpop.xlane.xlu0 %103
      %v105 = vmul.f32 %v104, 0.03125
      %v106 = vmul.f32 %v101, %v101
      %v107 = vsub.f32 %v105, %v106
      %v108 = vmax.f32 %v107, 0.0
      %v109 = vsub.f32 %v98, %v101
      %v110 = vadd.f32 %v108, 1e-05
      %v111 = vrsqrt.pop %v110
      %v112 = vmul.f32 %v109, %v111
      %v113 = vlaneseq
      %v114 = vshrl.u32 %v113, 7
      %v115 = vsub.s32 0, %v114
      %v116 = vrot.slane %v96, %v115
      %v117 = vmul.f32 %v112, %v116
      %v118 = vlaneseq
      %v119 = vshrl.u32 %v118, 7
      %v120 = vsub.s32 0, %v119
      %v121 = vrot.slane %v97, %v120
      %v122 = vadd.f32 %v117, %v121
      %v123 = vld [vmem:[%s1] sm:$0x1]
      %vm124 = vcmask 1040384
      %v125 = vsel %vm124, %v123, 0.0
      %126 = vadd.xlane.f32.xlu0 %v125
      %v127 = vpop.xlane.xlu0 %126
      %v128 = vmul.f32 %v127, 0.03125
      %v129 = vmul.f32 %v123, %v123
      %v130 = vsel %vm124, %v129, 0.0
      %131 = vadd.xlane.f32.xlu0 %v130
      %v132 = vpop.xlane.xlu0 %131
      %v133 = vmul.f32 %v132, 0.03125
      %v134 = vmul.f32 %v128, %v128
      %v135 = vsub.f32 %v133, %v134
      %v136 = vmax.f32 %v135, 0.0
      %v137 = vsub.f32 %v123, %v128
      %v138 = vadd.f32 %v136, 1e-05
      %v139 = vrsqrt.pop %v138
      %v140 = vmul.f32 %v137, %v139
      %v141 = vmul.f32 %v140, %v96
      %v142 = vadd.f32 %v141, %v97
      %p143 = scmp.eq.s32.totalorder 0, 0
      %v144 = vld [vmem:[#allocation8] sm:$0x1]
      %s145 = scalar_select %p143, 1, 0
      %v146 = vstv %s145
      %vm147 = vcmp.eq.s32.totalorder %v146, 1
      %v148 = vsel %vm147, %v144, %v142
      %v149 = vrot.slane %v122, 7
      %v150 = vlaneseq
      %v151 = vshrl.u32 %v150, 7
      %vm152 = vcmp.eq.s32.totalorder %v151, 0
      %v153 = vlaneseq
      %v154 = vshrl.u32 %v153, 7
      %v155 = vsub.s32 0, %v154
      %v156 = vrot.slane %v148, %v155
      %v157 = vsel %vm152, %v156, %v149
      %v158 = vsub.f32 %v157, %v122
      %v159 = vld [vmem:[#allocation8 + $0x3] sm:$0x1]
      %v160 = vlaneseq
      %v161 = vshrl.u32 %v160, 7
      %v162 = vsub.s32 0, %v161
      %v163 = vrot.slane %v159, %v162
      %v164 = vmul.f32 %v158, %v163
      %v165 = vadd.f32 %v122, %v164
      %v166 = vld [vmem:[#allocation8 + $0x4] sm:$0x1]
      %v167 = vlaneseq
      %v168 = vshrl.u32 %v167, 7
      %v169 = vsub.s32 0, %v168
      %v170 = vrot.slane %v166, %v169
      %v171 = vmul.f32 %v158, %v170
      %v172 = vadd.f32 %v122, %v171
      %v173 = vpack.c.bf16 %v165, %v165
      %174 = vst [vmem:[#allocation2] sm:$0xf] %v173
      %v175 = vpack.c.bf16 %v172, %v172
      %v176 = vld [vmem:[#allocation11] sm:$0xf]
      %v177 = vld [vmem:[#allocation11 + $0x4] sm:$0xf]
      %v178 = vld [vmem:[#allocation11 + $0x8] sm:$0xf]
      %v179 = vld [vmem:[#allocation11 + $0xc] sm:$0xf]
      %v180 = vld [vmem:[#allocation11 + $0x10] sm:$0xf]
      %v181 = vld [vmem:[#allocation11 + $0x14] sm:$0xf]
      %v182 = vld [vmem:[#allocation11 + $0x18] sm:$0xf]
      %v183 = vld [vmem:[#allocation11 + $0x1c] sm:$0xf]
      %v184 = vld [vmem:[#allocation11 + $0x20] sm:$0xf]
      %v185 = vld [vmem:[#allocation11 + $0x24] sm:$0xf]
      %v186 = vld [vmem:[#allocation11 + $0x28] sm:$0xf]
      %v187 = vld [vmem:[#allocation11 + $0x2c] sm:$0xf]
      %v188 = vld [vmem:[#allocation11 + $0x30] sm:$0xf]
      %v189 = vld [vmem:[#allocation11 + $0x34] sm:$0xf]
      %v190 = vld [vmem:[#allocation11 + $0x38] sm:$0xf]
      %v191 = vld [vmem:[#allocation11 + $0x3c] sm:$0xf]
      %v208 = vunpack.c.l.b16 %v176
      %v209 = vunpack.c.l.b16 %v177
      %v210 = vunpack.c.l.b16 %v178
      %v211 = vunpack.c.l.b16 %v179
      %v212 = vunpack.c.l.b16 %v180
      %v213 = vunpack.c.l.b16 %v181
      %v214 = vunpack.c.l.b16 %v182
      %v215 = vunpack.c.l.b16 %v183
      %v216 = vunpack.c.l.b16 %v184
      %v217 = vunpack.c.l.b16 %v185
      %v218 = vunpack.c.l.b16 %v186
      %v219 = vunpack.c.l.b16 %v187
      %v220 = vunpack.c.l.b16 %v188
      %v221 = vunpack.c.l.b16 %v189
      %v222 = vunpack.c.l.b16 %v190
      %v223 = vunpack.c.l.b16 %v191
      %v224 = vpack.c.b16 %v209, %v208
      %v225 = vpack.c.b16 %v211, %v210
      %v226 = vpack.c.b16 %v213, %v212
      %v227 = vpack.c.b16 %v215, %v214
      %v228 = vpack.c.b16 %v217, %v216
      %v229 = vpack.c.b16 %v219, %v218
      %v230 = vpack.c.b16 %v221, %v220
      %v231 = vpack.c.b16 %v223, %v222
      %240 = vmatprep.subr.bf16.mxu0 0
      %241 = vmatpush1.bf16.msra.mxu0 %v224
      %242 = vmatprep.subr.bf16.mxu0 0
      %243 = vmatpush1.bf16.msra.mxu0 %v225
      %244 = vmatprep.subr.bf16.mxu0 0
      %245 = vmatpush1.bf16.msra.mxu0 %v226
      %246 = vmatprep.subr.bf16.mxu0 0
      %247 = vmatpush1.bf16.msra.mxu0 %v227
      %248 = vmatprep.subr.bf16.mxu0 0
      %249 = vmatpush1.bf16.msra.mxu0 %v228
      %250 = vmatprep.subr.bf16.mxu0 0
      %251 = vmatpush1.bf16.msra.mxu0 %v229
      %252 = vmatprep.subr.bf16.mxu0 0
      %253 = vmatpush1.bf16.msra.mxu0 %v230
      %254 = vmatprep.subr.bf16.mxu0 0
      %255 = vmatpush1.bf16.msra.mxu0 %v231
      %256 = vmatprep.subr.bf16.mxu0 0
      %257 = vmatpush1.bf16.msra.mxu0 0
      %258 = vmatprep.subr.bf16.mxu0 0
      %259 = vmatpush1.bf16.msra.mxu0 0
      %260 = vmatprep.subr.bf16.mxu0 0
      %261 = vmatpush1.bf16.msra.mxu0 0
      %262 = vmatprep.subr.bf16.mxu0 0
      %263 = vmatpush1.bf16.msra.mxu0 0
      %264 = vmatprep.subr.bf16.mxu0 0
      %265 = vmatpush1.bf16.msra.mxu0 0
      %266 = vmatprep.subr.bf16.mxu0 0
      %267 = vmatpush1.bf16.msra.mxu0 0
      %268 = vmatprep.subr.bf16.mxu0 0
      %269 = vmatpush1.bf16.msra.mxu0 0
      %270 = vmatprep.subr.bf16.mxu0 0
      %271 = vmatpush1.bf16.msra.mxu0 0
      %272 = vmatprep.mubr.bf16.mxu0 0
      %273 = vmatmul.mubr.bf16.gmra.mrb[0].mxu0 %v175
      %v274 = vpop.f32.mrb[0].mxu0
      %v275 = vadd.f32 0.0, %v274
      %v276 = vpop.f32.mrb[0].mxu0
      %v277 = vpop.f32.mrb[0].mxu0
      %v278 = vpop.f32.mrb[0].mxu0
      %279 = vdwg.mxu0
      %v280 = vxor.u32 %v275, 2147483648
      %v281 = vmul.f32 %v280, 1.442695
      %v282 = vpow.pop %v281
      %v283 = vadd.f32 %v282, 1.0
      %v284 = vrcp.pop %v283
      %v285 = vmul.f32 1.0, %v284
      %286 = vst [vmem:[#allocation3] sm:$0xff] %v285
      %287 = vst [vmem:[#allocation4] sm:$0xff] 0.0
      %288 = vst [vmem:[#allocation15 - $0x7] sm:$0x80] %v122
    $region49: #{tpu_custom_call.1} parent=1 // pred_fallthru
      _
    %v289 = vld [vmem:[#allocation2] sm:$0xf]
    %v290 = vld [vmem:[#allocation10] sm:$0xf]
    %v291 = vld [vmem:[#allocation10 + $0x4] sm:$0xf]
    %v292 = vld [vmem:[#allocation10 + $0x8] sm:$0xf]
    %v293 = vld [vmem:[#allocation10 + $0xc] sm:$0xf]
    %v294 = vld [vmem:[#allocation10 + $0x10] sm:$0xf]
    %v295 = vld [vmem:[#allocation10 + $0x14] sm:$0xf]
    %v296 = vld [vmem:[#allocation10 + $0x18] sm:$0xf]
    %v297 = vld [vmem:[#allocation10 + $0x1c] sm:$0xf]
    %v298 = vld [vmem:[#allocation10 + $0x20] sm:$0xf]
    %v299 = vld [vmem:[#allocation10 + $0x24] sm:$0xf]
    %v300 = vld [vmem:[#allocation10 + $0x28] sm:$0xf]
    %v301 = vld [vmem:[#allocation10 + $0x2c] sm:$0xf]
    %v302 = vld [vmem:[#allocation10 + $0x30] sm:$0xf]
    %v303 = vld [vmem:[#allocation10 + $0x34] sm:$0xf]
    %v304 = vld [vmem:[#allocation10 + $0x38] sm:$0xf]
    %v305 = vld [vmem:[#allocation10 + $0x3c] sm:$0xf]
    %v322 = vunpack.c.l.b16 %v290
    %v323 = vunpack.c.l.b16 %v291
    %v324 = vunpack.c.l.b16 %v292
    %v325 = vunpack.c.l.b16 %v293
    %v326 = vunpack.c.l.b16 %v294
    %v327 = vunpack.c.l.b16 %v295
    %v328 = vunpack.c.l.b16 %v296
    %v329 = vunpack.c.l.b16 %v297
    %v330 = vunpack.c.l.b16 %v298
    %v331 = vunpack.c.l.b16 %v299
    %v332 = vunpack.c.l.b16 %v300
    %v333 = vunpack.c.l.b16 %v301
    %v334 = vunpack.c.l.b16 %v302
    %v335 = vunpack.c.l.b16 %v303
    %v336 = vunpack.c.l.b16 %v304
    %v337 = vunpack.c.l.b16 %v305
    %v338 = vpack.c.b16 %v323, %v322
    %v339 = vpack.c.b16 %v325, %v324
    %v340 = vpack.c.b16 %v327, %v326
    %v341 = vpack.c.b16 %v329, %v328
    %v342 = vpack.c.b16 %v331, %v330
    %v343 = vpack.c.b16 %v333, %v332
    %v344 = vpack.c.b16 %v335, %v334
    %v345 = vpack.c.b16 %v337, %v336
    %354 = vmatprep.subr.bf16.mxu0 0
    %355 = vmatpush1.bf16.msra.mxu0 %v338
    %356 = vmatprep.subr.bf16.mxu0 0
    %357 = vmatpush1.bf16.msra.mxu0 %v339
    %358 = vmatprep.subr.bf16.mxu0 0
    %359 = vmatpush1.bf16.msra.mxu0 %v340
    %360 = vmatprep.subr.bf16.mxu0 0
    %361 = vmatpush1.bf16.msra.mxu0 %v341
    %362 = vmatprep.subr.bf16.mxu0 0
    %363 = vmatpush1.bf16.msra.mxu0 %v342
    %364 = vmatprep.subr.bf16.mxu0 0
    %365 = vmatpush1.bf16.msra.mxu0 %v343
    %366 = vmatprep.subr.bf16.mxu0 0
    %367 = vmatpush1.bf16.msra.mxu0 %v344
    %368 = vmatprep.subr.bf16.mxu0 0
    %369 = vmatpush1.bf16.msra.mxu0 %v345
    %370 = vmatprep.subr.bf16.mxu0 0
    %371 = vmatpush1.bf16.msra.mxu0 0
    %372 = vmatprep.subr.bf16.mxu0 0
    %373 = vmatpush1.bf16.msra.mxu0 0
    %374 = vmatprep.subr.bf16.mxu0 0
    %375 = vmatpush1.bf16.msra.mxu0 0
    %376 = vmatprep.subr.bf16.mxu0 0
    %377 = vmatpush1.bf16.msra.mxu0 0
    %378 = vmatprep.subr.bf16.mxu0 0
    %379 = vmatpush1.bf16.msra.mxu0 0
    %380 = vmatprep.subr.bf16.mxu0 0
    %381 = vmatpush1.bf16.msra.mxu0 0
    %382 = vmatprep.subr.bf16.mxu0 0
    %383 = vmatpush1.bf16.msra.mxu0 0
    %384 = vmatprep.subr.bf16.mxu0 0
    %385 = vmatpush1.bf16.msra.mxu0 0
    %386 = vmatprep.mubr.bf16.mxu0 0
    %387 = vmatmul.mubr.bf16.gmra.mrb[0].mxu0 %v289
    %v388 = vpop.f32.mrb[0].mxu0
    %v389 = vadd.f32 0.0, %v388
    %v390 = vpop.f32.mrb[0].mxu0
    %v391 = vpop.f32.mrb[0].mxu0
    %v392 = vpop.f32.mrb[0].mxu0
    %393 = vdwg.mxu0
    %v394 = vmax.f32 %v389, 0.0
    %v395 = vmul.f32 %v394, %v394
    %v396 = vld [vmem:[#allocation4] sm:$0xff]
    %v397 = vpack.c.bf16 %v395, %v395
    %v398 = vld [vmem:[#allocation13] sm:$0xf]
    %v399 = vld [vmem:[#allocation13 + $0x4] sm:$0xf]
    %v400 = vld [vmem:[#allocation13 + $0x8] sm:$0xf]
    %v401 = vld [vmem:[#allocation13 + $0xc] sm:$0xf]
    %v402 = vld [vmem:[#allocation13 + $0x10] sm:$0xf]
    %v403 = vld [vmem:[#allocation13 + $0x14] sm:$0xf]
    %v404 = vld [vmem:[#allocation13 + $0x18] sm:$0xf]
    %v405 = vld [vmem:[#allocation13 + $0x1c] sm:$0xf]
    %v406 = vld [vmem:[#allocation13 + $0x20] sm:$0xf]
    %v407 = vld [vmem:[#allocation13 + $0x24] sm:$0xf]
    %v408 = vld [vmem:[#allocation13 + $0x28] sm:$0xf]
    %v409 = vld [vmem:[#allocation13 + $0x2c] sm:$0xf]
    %v410 = vld [vmem:[#allocation13 + $0x30] sm:$0xf]
    %v411 = vld [vmem:[#allocation13 + $0x34] sm:$0xf]
    %v412 = vld [vmem:[#allocation13 + $0x38] sm:$0xf]
    %v413 = vld [vmem:[#allocation13 + $0x3c] sm:$0xf]
    %v430 = vunpack.c.l.b16 %v398
    %v431 = vunpack.c.l.b16 %v399
    %v432 = vunpack.c.l.b16 %v400
    %v433 = vunpack.c.l.b16 %v401
    %v434 = vunpack.c.l.b16 %v402
    %v435 = vunpack.c.l.b16 %v403
    %v436 = vunpack.c.l.b16 %v404
    %v437 = vunpack.c.l.b16 %v405
    %v438 = vunpack.c.l.b16 %v406
    %v439 = vunpack.c.l.b16 %v407
    %v440 = vunpack.c.l.b16 %v408
    %v441 = vunpack.c.l.b16 %v409
    %v442 = vunpack.c.l.b16 %v410
    %v443 = vunpack.c.l.b16 %v411
    %v444 = vunpack.c.l.b16 %v412
    %v445 = vunpack.c.l.b16 %v413
    %v446 = vpack.c.b16 %v431, %v430
    %v447 = vpack.c.b16 %v433, %v432
    %v448 = vpack.c.b16 %v435, %v434
    %v449 = vpack.c.b16 %v437, %v436
    %v450 = vpack.c.b16 %v439, %v438
    %v451 = vpack.c.b16 %v441, %v440
    %v452 = vpack.c.b16 %v443, %v442
    %v453 = vpack.c.b16 %v445, %v444
    %462 = vmatprep.subr.bf16.mxu0 0
    %463 = vmatpush1.bf16.msra.mxu0 %v446
    %464 = vmatprep.subr.bf16.mxu0 0
    %465 = vmatpush1.bf16.msra.mxu0 %v447
    %466 = vmatprep.subr.bf16.mxu0 0
    %467 = vmatpush1.bf16.msra.mxu0 %v448
    %468 = vmatprep.subr.bf16.mxu0 0
    %469 = vmatpush1.bf16.msra.mxu0 %v449
    %470 = vmatprep.subr.bf16.mxu0 0
    %471 = vmatpush1.bf16.msra.mxu0 %v450
    %472 = vmatprep.subr.bf16.mxu0 0
    %473 = vmatpush1.bf16.msra.mxu0 %v451
    %474 = vmatprep.subr.bf16.mxu0 0
    %475 = vmatpush1.bf16.msra.mxu0 %v452
    %476 = vmatprep.subr.bf16.mxu0 0
    %477 = vmatpush1.bf16.msra.mxu0 %v453
    %478 = vmatprep.subr.bf16.mxu0 0
    %479 = vmatpush1.bf16.msra.mxu0 0
    %480 = vmatprep.subr.bf16.mxu0 0
    %481 = vmatpush1.bf16.msra.mxu0 0
    %482 = vmatprep.subr.bf16.mxu0 0
    %483 = vmatpush1.bf16.msra.mxu0 0
    %484 = vmatprep.subr.bf16.mxu0 0
    %485 = vmatpush1.bf16.msra.mxu0 0
    %486 = vmatprep.subr.bf16.mxu0 0
    %487 = vmatpush1.bf16.msra.mxu0 0
    %488 = vmatprep.subr.bf16.mxu0 0
    %489 = vmatpush1.bf16.msra.mxu0 0
    %490 = vmatprep.subr.bf16.mxu0 0
    %491 = vmatpush1.bf16.msra.mxu0 0
    %492 = vmatprep.subr.bf16.mxu0 0
    %493 = vmatpush1.bf16.msra.mxu0 0
    %494 = vmatprep.mubr.bf16.mxu0 0
    %495 = vmatmul.mubr.bf16.gmra.mrb[0].mxu0 %v397
    %v496 = vpop.f32.mrb[0].mxu0
    %v497 = vadd.f32 0.0, %v496
    %v498 = vpop.f32.mrb[0].mxu0
    %v499 = vpop.f32.mrb[0].mxu0
    %v500 = vpop.f32.mrb[0].mxu0
    %501 = vdwg.mxu0
    %v502 = vadd.f32 %v396, %v497
    %503 = vst [vmem:[#allocation4] sm:$0xff] %v502
    // Predicated region
    $region50: #{tpu_custom_call.1} parent=1 // pred_check
      %p504 = pneg %p92
    $region51: #{tpu_custom_call.1} parent=1 // pred_check_branch
      %506 = sbr.rel (%p504) target = $region53
    $region52: #{tpu_custom_call.1} parent=1 // pred_region
      %v507 = vld [vmem:[#allocation3] sm:$0xff]
      %v508 = vld [vmem:[#allocation4] sm:$0xff]
      %v509 = vmul.f32 %v507, %v508
      %v510 = vld [vmem:[#allocation5] sm:$0xff]
      %v511 = vadd.f32 %v509, %v510
      %512 = vst [vmem:[#allocation14] sm:$0xff] %v511
    $region53: #{tpu_custom_call.1} parent=1 // pred_fallthru
      _
    // Predicated region
    $region54: #{tpu_custom_call.1} parent=1 // pred_check
      _
    $region55: #{tpu_custom_call.1} parent=1 // pred_check_branch
      %514 = sbr.rel (0) target = $region57
    $region56: #{tpu_custom_call.1} parent=1 // pred_region
      %s516 = ssub.s32 128, 128
      %517 = vsyncadd [#allocation7], %s516
      %s519 = sshll.u32 [#allocation14], 4
      %s520 = int_to_ptr.vmem [resolvable:$true] %s519
      %522 = dma.vmem_to_hbm [thread:$0]  %s520, 128, %s6, [#allocation7]
    $region57: #{tpu_custom_call.1} parent=1 // pred_fallthru
      _
    // Predicated region
    $region58: #{tpu_custom_call.1} parent=1 // pred_check
      _
    $region59: #{tpu_custom_call.1} parent=1 // pred_check_branch
      %524 = sbr.rel (0) target = $region61
    $region60: #{tpu_custom_call.1} parent=1 // pred_region
      %s526 = ssub.s32 16, 16
      %527 = vsyncadd [#allocation16], %s526
      %s529 = sshll.u32 [#allocation15], 4
      %s530 = int_to_ptr.vmem [resolvable:$true] %s529
      %532 = dma.vmem_to_hbm [thread:$0]  %s530, 16, %s7, [#allocation16]
    $region61: #{tpu_custom_call.1} parent=1 // pred_fallthru
      _
    // Predicated region
    $region62: #{tpu_custom_call.1} parent=1 // pred_check
      _
    $region63: #{tpu_custom_call.1} parent=1 // pred_check_branch
      %534 = sbr.rel (0) target = $region65
    $region64: #{tpu_custom_call.1} parent=1 // pred_region
      %535 = dma.done [#allocation7], 128
    $region65: #{tpu_custom_call.1} parent=1 // pred_fallthru
      _
    // Predicated region
    $region66: #{tpu_custom_call.1} parent=1 // pred_check
      _
    $region67: #{tpu_custom_call.1} parent=1 // pred_check_branch
      %537 = sbr.rel (0) target = $region69
    $region68: #{tpu_custom_call.1} parent=1 // pred_region
      %538 = dma.done [#allocation16], 16
    $region69: #{tpu_custom_call.1} parent=1 // pred_fallthru
      _
    %539 = vsyncpa [#allocation6], 1
    %540 = vsyncpa [#allocation9], 1
    %541 = vsyncpa [#allocation12], 1
    %542 = vsyncpa [#allocation7], 1
    %543 = vsyncpa [#allocation16], 1

// kernel: tpu_custom_call.1
$region0: #{tpu_custom_call.1}
  #allocation0 [shape = 'u32[]', space=smem, size = 0x4, offset = 0x4, fixed_abs, tag = 'smem constant byte address 0x4 - core index']
  #allocation1 [shape = 'u32[144,128]{1,0:T(1,128)}', space=vmem, size = 0x12000, scoped, tag = 'internal scratch']
  #allocation2 [shape = 'bf16[8,128]{1,0:T(8,128)(2,1)}', space=vmem, size = 0x800, scoped, tag = 'scratch operand']
  #allocation3 [shape = 'f32[8,128]{1,0:T(8,128)}', space=vmem, size = 0x1000, scoped, tag = 'scratch operand']
  #allocation4 [shape = 'f32[8,128]{1,0:T(8,128)}', space=vmem, size = 0x1000, scoped, tag = 'scratch operand']
  %s0 = inlined_call_operand.hbm [shape: f32[8,128], index: 0, kind: input, shape index: {}]
  %s1 = inlined_call_operand.vmem [shape: f32[1,1,128], index: 1, kind: input, shape index: {}]
  %s2 = inlined_call_operand.hbm [shape: f32[8,128], index: 2, kind: input, shape index: {}]
  %s3 = inlined_call_operand.hbm [shape: bf16[128,128], index: 3, kind: input, shape index: {}]
  %s4 = inlined_call_operand.hbm [shape: bf16[128,128], index: 4, kind: input, shape index: {}]
  %s5 = inlined_call_operand.hbm [shape: bf16[128,128], index: 5, kind: input, shape index: {}]
  %s6 = inlined_call_operand.hbm [shape: f32[8,128], index: 6, kind: output, shape index: {0}]
  %s7 = inlined_call_operand.hbm [shape: f32[1,1,128], index: 7, kind: output, shape index: {1}]
  %8 = xla_tuple %s6, %s7
  %s9 = sld [smem:[#allocation0]]
  $region70: #{tpu_custom_call.1} parent=0
    _
  %s11 = ssub.s32 1, %s9
  %s12 = scalar_select 0, %s11, %s9
  $region1: #{tpu_custom_call.1} parent=0
    #allocation5 [shape = 'u8[4096]{0}', space=vmem, size = 0x1000, scoped, tag = 'input window, operand 0, single buffered']
    #allocation6 [shape = 's32[1]{0}', space=sflag, size = 0x4, scoped, tag = 'scoped memory for tpu_custom_call.1']
    #allocation7 [shape = 's32[1]{0}', space=sflag, size = 0x4, scoped, tag = 'scoped memory for tpu_custom_call.1']
    #allocation8 [shape = 'u8[4096]{0}', space=vmem, size = 0x1000, scoped, tag = 'input window, operand 2, single buffered']
    #allocation9 [shape = 's32[1]{0}', space=sflag, size = 0x4, scoped, tag = 'scoped memory for tpu_custom_call.1']
    #allocation10 [shape = 'u8[32768]{0}', space=vmem, size = 0x8000, scoped, tag = 'input window, operand 3, single buffered']
    #allocation11 [shape = 'u8[32768]{0}', space=vmem, size = 0x8000, scoped, tag = 'input window, operand 4, single buffered']
    #allocation12 [shape = 's32[1]{0}', space=sflag, size = 0x4, scoped, tag = 'scoped memory for tpu_custom_call.1']
    #allocation13 [shape = 'u8[32768]{0}', space=vmem, size = 0x8000, scoped, tag = 'input window, operand 5, single buffered']
    #allocation14 [shape = 'u8[4096]{0}', space=vmem, size = 0x1000, scoped, tag = 'output window, operand 0, single buffered']
    #allocation15 [shape = 'u8[512]{0}', space=vmem, size = 0x400, scoped, tag = 'output window, operand 1, single buffered']
    #allocation16 [shape = 's32[1]{0}', space=sflag, size = 0x4, scoped, tag = 'scoped memory for tpu_custom_call.1']
    %13 = vsyncpa [#allocation6], 0
    %14 = vsyncpa [#allocation9], 0
    %15 = vsyncpa [#allocation12], 0
    %16 = vsyncpa [#allocation7], 0
    %17 = vsyncpa [#allocation16], 0
    // Predicated region
    $region2: #{tpu_custom_call.1} parent=1 // pred_check
      _
    $region3: #{tpu_custom_call.1} parent=1 // pred_check_branch
      %19 = sbr.rel (0) target = $region5
    $region4: #{tpu_custom_call.1} parent=1 // pred_region
      %s21 = ssub.s32 128, 128
      %22 = vsyncadd [#allocation6], %s21
      %s24 = sshll.u32 [#allocation5], 4
      %s25 = int_to_ptr.vmem [resolvable:$true] %s24
      %27 = dma.hbm_to_vmem [thread:$0]  %s0, 128, %s25, [#allocation6]
    $region5: #{tpu_custom_call.1} parent=1 // pred_fallthru
      _
    // Predicated region
    $region6: #{tpu_custom_call.1} parent=1 // pred_check
      _
    $region7: #{tpu_custom_call.1} parent=1 // pred_check_branch
      %29 = sbr.rel (0) target = $region9
    $region8: #{tpu_custom_call.1} parent=1 // pred_region
      _
    $region9: #{tpu_custom_call.1} parent=1 // pred_fallthru
      _
    // Predicated region
    $region10: #{tpu_custom_call.1} parent=1 // pred_check
      _
    $region11: #{tpu_custom_call.1} parent=1 // pred_check_branch
      %31 = sbr.rel (0) target = $region13
    $region12: #{tpu_custom_call.1} parent=1 // pred_region
      %s33 = ssub.s32 128, 128
      %34 = vsyncadd [#allocation9], %s33
      %s36 = sshll.u32 [#allocation8], 4
      %s37 = int_to_ptr.vmem [resolvable:$true] %s36
      %39 = dma.hbm_to_vmem [thread:$0]  %s2, 128, %s37, [#allocation9]
    $region13: #{tpu_custom_call.1} parent=1 // pred_fallthru
      _
    // Predicated region
    $region14: #{tpu_custom_call.1} parent=1 // pred_check
      _
    $region15: #{tpu_custom_call.1} parent=1 // pred_check_branch
      %41 = sbr.rel (0) target = $region17
    $region16: #{tpu_custom_call.1} parent=1 // pred_region
      %s43 = ssub.s32 1024, 1024
      %44 = vsyncadd [#allocation9], %s43
      %s45 = sshll.u32 [#allocation10], 4
      %s46 = int_to_ptr.vmem [resolvable:$true] %s45
      %51 = dma.hbm_to_vmem [thread:$0]  %s3, 1024, %s46, [#allocation9], 64, 64, 4
    $region17: #{tpu_custom_call.1} parent=1 // pred_fallthru
      _
    // Predicated region
    $region18: #{tpu_custom_call.1} parent=1 // pred_check
      _
    $region19: #{tpu_custom_call.1} parent=1 // pred_check_branch
      %53 = sbr.rel (0) target = $region21
    $region20: #{tpu_custom_call.1} parent=1 // pred_region
      %s55 = ssub.s32 1024, 1024
      %56 = vsyncadd [#allocation12], %s55
      %s57 = sshll.u32 [#allocation11], 4
      %s58 = int_to_ptr.vmem [resolvable:$true] %s57
      %63 = dma.hbm_to_vmem [thread:$0]  %s4, 1024, %s58, [#allocation12], 64, 64, 4
    $region21: #{tpu_custom_call.1} parent=1 // pred_fallthru
      _
    // Predicated region
    $region22: #{tpu_custom_call.1} parent=1 // pred_check
      _
    $region23: #{tpu_custom_call.1} parent=1 // pred_check_branch
      %65 = sbr.rel (0) target = $region25
    $region24: #{tpu_custom_call.1} parent=1 // pred_region
      %s67 = ssub.s32 1024, 1024
      %68 = vsyncadd [#allocation12], %s67
      %s69 = sshll.u32 [#allocation13], 4
      %s70 = int_to_ptr.vmem [resolvable:$true] %s69
      %75 = dma.hbm_to_vmem [thread:$0]  %s5, 1024, %s70, [#allocation12], 64, 64, 4
    $region25: #{tpu_custom_call.1} parent=1 // pred_fallthru
      _
    // Predicated region
    $region26: #{tpu_custom_call.1} parent=1 // pred_check
      _
    $region27: #{tpu_custom_call.1} parent=1 // pred_check_branch
      %77 = sbr.rel (0) target = $region29
    $region28: #{tpu_custom_call.1} parent=1 // pred_region
      %78 = dma.done [#allocation6], 128
    $region29: #{tpu_custom_call.1} parent=1 // pred_fallthru
      _
    // Predicated region
    $region30: #{tpu_custom_call.1} parent=1 // pred_check
      _
    $region31: #{tpu_custom_call.1} parent=1 // pred_check_branch
      %80 = sbr.rel (0) target = $region33
    $region32: #{tpu_custom_call.1} parent=1 // pred_region
      %81 = dma.done [#allocation9], 128
    $region33: #{tpu_custom_call.1} parent=1 // pred_fallthru
      _
    // Predicated region
    $region34: #{tpu_custom_call.1} parent=1 // pred_check
      _
    $region35: #{tpu_custom_call.1} parent=1 // pred_check_branch
      %83 = sbr.rel (0) target = $region37
    $region36: #{tpu_custom_call.1} parent=1 // pred_region
      %84 = dma.done [#allocation9], 1024
    $region37: #{tpu_custom_call.1} parent=1 // pred_fallthru
      _
    // Predicated region
    $region38: #{tpu_custom_call.1} parent=1 // pred_check
      _
    $region39: #{tpu_custom_call.1} parent=1 // pred_check_branch
      %86 = sbr.rel (0) target = $region41
    $region40: #{tpu_custom_call.1} parent=1 // pred_region
      %87 = dma.done [#allocation12], 1024
    $region41: #{tpu_custom_call.1} parent=1 // pred_fallthru
      _
    // Predicated region
    $region42: #{tpu_custom_call.1} parent=1 // pred_check
      _
    $region43: #{tpu_custom_call.1} parent=1 // pred_check_branch
      %89 = sbr.rel (0) target = $region45
    $region44: #{tpu_custom_call.1} parent=1 // pred_region
      %90 = dma.done [#allocation12], 1024
    $region45: #{tpu_custom_call.1} parent=1 // pred_fallthru
      _
    %p92 = scmp.eq.s32.totalorder 0, 0
    // Predicated region
    $region46: #{tpu_custom_call.1} parent=1 // pred_check
      %p93 = pneg %p92
    $region47: #{tpu_custom_call.1} parent=1 // pred_check_branch
      %95 = sbr.rel (%p93) target = $region49
    $region48: #{tpu_custom_call.1} parent=1 // pred_region
      %v96 = vld [vmem:[#allocation8 + $0x1] sm:$0x1]
      %v97 = vld [vmem:[#allocation8 + $0x2] sm:$0x1]
      %v98 = vld [vmem:[#allocation5] sm:$0xff]
      %99 = vadd.xlane.f32.xlu0 %v98
      %v100 = vpop.xlane.xlu0 %99
      %v101 = vmul.f32 %v100, 0.03125
      %v102 = vmul.f32 %v98, %v98
      %103 = vadd.xlane.f32.xlu0 %v102
      %v104 = vpop.xlane.xlu0 %103
      %v105 = vmul.f32 %v104, 0.03125
      %v106 = vmul.f32 %v101, %v101
      %v107 = vsub.f32 %v105, %v106
      %v108 = vmax.f32 %v107, 0.0
      %v109 = vsub.f32 %v98, %v101
      %v110 = vadd.f32 %v108, 1e-05
      %v111 = vrsqrt.pop %v110
      %v112 = vmul.f32 %v109, %v111
      %v113 = vlaneseq
      %v114 = vshrl.u32 %v113, 7
      %v115 = vsub.s32 0, %v114
      %v116 = vrot.slane %v96, %v115
      %v117 = vmul.f32 %v112, %v116
      %v118 = vlaneseq
      %v119 = vshrl.u32 %v118, 7
      %v120 = vsub.s32 0, %v119
      %v121 = vrot.slane %v97, %v120
      %v122 = vadd.f32 %v117, %v121
      %v123 = vld [vmem:[%s1] sm:$0x1]
      %vm124 = vcmask 1040384
      %v125 = vsel %vm124, %v123, 0.0
      %126 = vadd.xlane.f32.xlu0 %v125
      %v127 = vpop.xlane.xlu0 %126
      %v128 = vmul.f32 %v127, 0.03125
      %v129 = vmul.f32 %v123, %v123
      %v130 = vsel %vm124, %v129, 0.0
      %131 = vadd.xlane.f32.xlu0 %v130
      %v132 = vpop.xlane.xlu0 %131
      %v133 = vmul.f32 %v132, 0.03125
      %v134 = vmul.f32 %v128, %v128
      %v135 = vsub.f32 %v133, %v134
      %v136 = vmax.f32 %v135, 0.0
      %v137 = vsub.f32 %v123, %v128
      %v138 = vadd.f32 %v136, 1e-05
      %v139 = vrsqrt.pop %v138
      %v140 = vmul.f32 %v137, %v139
      %v141 = vmul.f32 %v140, %v96
      %v142 = vadd.f32 %v141, %v97
      %p143 = scmp.eq.s32.totalorder 0, 0
      %v144 = vld [vmem:[#allocation8] sm:$0x1]
      %s145 = scalar_select %p143, 1, 0
      %v146 = vstv %s145
      %vm147 = vcmp.eq.s32.totalorder %v146, 1
      %v148 = vsel %vm147, %v144, %v142
      %v149 = vrot.slane %v122, 7
      %v150 = vlaneseq
      %v151 = vshrl.u32 %v150, 7
      %vm152 = vcmp.eq.s32.totalorder %v151, 0
      %v153 = vlaneseq
      %v154 = vshrl.u32 %v153, 7
      %v155 = vsub.s32 0, %v154
      %v156 = vrot.slane %v148, %v155
      %v157 = vsel %vm152, %v156, %v149
      %v158 = vsub.f32 %v157, %v122
      %v159 = vld [vmem:[#allocation8 + $0x3] sm:$0x1]
      %v160 = vlaneseq
      %v161 = vshrl.u32 %v160, 7
      %v162 = vsub.s32 0, %v161
      %v163 = vrot.slane %v159, %v162
      %v164 = vmul.f32 %v158, %v163
      %v165 = vadd.f32 %v122, %v164
      %v166 = vld [vmem:[#allocation8 + $0x4] sm:$0x1]
      %v167 = vlaneseq
      %v168 = vshrl.u32 %v167, 7
      %v169 = vsub.s32 0, %v168
      %v170 = vrot.slane %v166, %v169
      %v171 = vmul.f32 %v158, %v170
      %v172 = vadd.f32 %v122, %v171
      %v173 = vpack.c.bf16 %v165, %v165
      %174 = vst [vmem:[#allocation2] sm:$0xf] %v173
      %v175 = vpack.c.bf16 %v172, %v172
      %v176 = vld [vmem:[#allocation11] sm:$0xf]
      %v177 = vld [vmem:[#allocation11 + $0x4] sm:$0xf]
      %v178 = vld [vmem:[#allocation11 + $0x8] sm:$0xf]
      %v179 = vld [vmem:[#allocation11 + $0xc] sm:$0xf]
      %v180 = vld [vmem:[#allocation11 + $0x10] sm:$0xf]
      %v181 = vld [vmem:[#allocation11 + $0x14] sm:$0xf]
      %v182 = vld [vmem:[#allocation11 + $0x18] sm:$0xf]
      %v183 = vld [vmem:[#allocation11 + $0x1c] sm:$0xf]
      %v184 = vld [vmem:[#allocation11 + $0x20] sm:$0xf]
      %v185 = vld [vmem:[#allocation11 + $0x24] sm:$0xf]
      %v186 = vld [vmem:[#allocation11 + $0x28] sm:$0xf]
      %v187 = vld [vmem:[#allocation11 + $0x2c] sm:$0xf]
      %v188 = vld [vmem:[#allocation11 + $0x30] sm:$0xf]
      %v189 = vld [vmem:[#allocation11 + $0x34] sm:$0xf]
      %v190 = vld [vmem:[#allocation11 + $0x38] sm:$0xf]
      %v191 = vld [vmem:[#allocation11 + $0x3c] sm:$0xf]
      %v208 = vunpack.c.l.b16 %v176
      %v209 = vunpack.c.l.b16 %v177
      %v210 = vunpack.c.l.b16 %v178
      %v211 = vunpack.c.l.b16 %v179
      %v212 = vunpack.c.l.b16 %v180
      %v213 = vunpack.c.l.b16 %v181
      %v214 = vunpack.c.l.b16 %v182
      %v215 = vunpack.c.l.b16 %v183
      %v216 = vunpack.c.l.b16 %v184
      %v217 = vunpack.c.l.b16 %v185
      %v218 = vunpack.c.l.b16 %v186
      %v219 = vunpack.c.l.b16 %v187
      %v220 = vunpack.c.l.b16 %v188
      %v221 = vunpack.c.l.b16 %v189
      %v222 = vunpack.c.l.b16 %v190
      %v223 = vunpack.c.l.b16 %v191
      %v224 = vpack.c.b16 %v209, %v208
      %v225 = vpack.c.b16 %v211, %v210
      %v226 = vpack.c.b16 %v213, %v212
      %v227 = vpack.c.b16 %v215, %v214
      %v228 = vpack.c.b16 %v217, %v216
      %v229 = vpack.c.b16 %v219, %v218
      %v230 = vpack.c.b16 %v221, %v220
      %v231 = vpack.c.b16 %v223, %v222
      %240 = vmatprep.subr.bf16.mxu0 0
      %241 = vmatpush1.bf16.msra.mxu0 %v224
      %242 = vmatprep.subr.bf16.mxu0 0
      %243 = vmatpush1.bf16.msra.mxu0 %v225
      %244 = vmatprep.subr.bf16.mxu0 0
      %245 = vmatpush1.bf16.msra.mxu0 %v226
      %246 = vmatprep.subr.bf16.mxu0 0
      %247 = vmatpush1.bf16.msra.mxu0 %v227
      %248 = vmatprep.subr.bf16.mxu0 0
      %249 = vmatpush1.bf16.msra.mxu0 %v228
      %250 = vmatprep.subr.bf16.mxu0 0
      %251 = vmatpush1.bf16.msra.mxu0 %v229
      %252 = vmatprep.subr.bf16.mxu0 0
      %253 = vmatpush1.bf16.msra.mxu0 %v230
      %254 = vmatprep.subr.bf16.mxu0 0
      %255 = vmatpush1.bf16.msra.mxu0 %v231
      %256 = vmatprep.subr.bf16.mxu0 0
      %257 = vmatpush1.bf16.msra.mxu0 0
      %258 = vmatprep.subr.bf16.mxu0 0
      %259 = vmatpush1.bf16.msra.mxu0 0
      %260 = vmatprep.subr.bf16.mxu0 0
      %261 = vmatpush1.bf16.msra.mxu0 0
      %262 = vmatprep.subr.bf16.mxu0 0
      %263 = vmatpush1.bf16.msra.mxu0 0
      %264 = vmatprep.subr.bf16.mxu0 0
      %265 = vmatpush1.bf16.msra.mxu0 0
      %266 = vmatprep.subr.bf16.mxu0 0
      %267 = vmatpush1.bf16.msra.mxu0 0
      %268 = vmatprep.subr.bf16.mxu0 0
      %269 = vmatpush1.bf16.msra.mxu0 0
      %270 = vmatprep.subr.bf16.mxu0 0
      %271 = vmatpush1.bf16.msra.mxu0 0
      %272 = vmatprep.mubr.bf16.mxu0 0
      %273 = vmatmul.mubr.bf16.gmra.mrb[0].mxu0 %v175
      %v274 = vpop.f32.mrb[0].mxu0
      %v275 = vadd.f32 0.0, %v274
      %v276 = vpop.f32.mrb[0].mxu0
      %v277 = vpop.f32.mrb[0].mxu0
      %v278 = vpop.f32.mrb[0].mxu0
      %279 = vdwg.mxu0
      %v280 = vxor.u32 %v275, 2147483648
      %v281 = vmul.f32 %v280, 1.442695
      %v282 = vpow.pop %v281
      %v283 = vadd.f32 %v282, 1.0
      %v284 = vrcp.pop %v283
      %v285 = vmul.f32 1.0, %v284
      %286 = vst [vmem:[#allocation3] sm:$0xff] %v285
      %287 = vst [vmem:[#allocation4] sm:$0xff] 0.0
      %288 = vst [vmem:[#allocation15 - $0x7] sm:$0x80] %v122
    $region49: #{tpu_custom_call.1} parent=1 // pred_fallthru
      _
    %v289 = vld [vmem:[#allocation2] sm:$0xf]
    %v290 = vld [vmem:[#allocation10] sm:$0xf]
    %v291 = vld [vmem:[#allocation10 + $0x4] sm:$0xf]
    %v292 = vld [vmem:[#allocation10 + $0x8] sm:$0xf]
    %v293 = vld [vmem:[#allocation10 + $0xc] sm:$0xf]
    %v294 = vld [vmem:[#allocation10 + $0x10] sm:$0xf]
    %v295 = vld [vmem:[#allocation10 + $0x14] sm:$0xf]
    %v296 = vld [vmem:[#allocation10 + $0x18] sm:$0xf]
    %v297 = vld [vmem:[#allocation10 + $0x1c] sm:$0xf]
    %v298 = vld [vmem:[#allocation10 + $0x20] sm:$0xf]
    %v299 = vld [vmem:[#allocation10 + $0x24] sm:$0xf]
    %v300 = vld [vmem:[#allocation10 + $0x28] sm:$0xf]
    %v301 = vld [vmem:[#allocation10 + $0x2c] sm:$0xf]
    %v302 = vld [vmem:[#allocation10 + $0x30] sm:$0xf]
    %v303 = vld [vmem:[#allocation10 + $0x34] sm:$0xf]
    %v304 = vld [vmem:[#allocation10 + $0x38] sm:$0xf]
    %v305 = vld [vmem:[#allocation10 + $0x3c] sm:$0xf]
    %v322 = vunpack.c.l.b16 %v290
    %v323 = vunpack.c.l.b16 %v291
    %v324 = vunpack.c.l.b16 %v292
    %v325 = vunpack.c.l.b16 %v293
    %v326 = vunpack.c.l.b16 %v294
    %v327 = vunpack.c.l.b16 %v295
    %v328 = vunpack.c.l.b16 %v296
    %v329 = vunpack.c.l.b16 %v297
    %v330 = vunpack.c.l.b16 %v298
    %v331 = vunpack.c.l.b16 %v299
    %v332 = vunpack.c.l.b16 %v300
    %v333 = vunpack.c.l.b16 %v301
    %v334 = vunpack.c.l.b16 %v302
    %v335 = vunpack.c.l.b16 %v303
    %v336 = vunpack.c.l.b16 %v304
    %v337 = vunpack.c.l.b16 %v305
    %v338 = vpack.c.b16 %v323, %v322
    %v339 = vpack.c.b16 %v325, %v324
    %v340 = vpack.c.b16 %v327, %v326
    %v341 = vpack.c.b16 %v329, %v328
    %v342 = vpack.c.b16 %v331, %v330
    %v343 = vpack.c.b16 %v333, %v332
    %v344 = vpack.c.b16 %v335, %v334
    %v345 = vpack.c.b16 %v337, %v336
    %354 = vmatprep.subr.bf16.mxu0 0
    %355 = vmatpush1.bf16.msra.mxu0 %v338
    %356 = vmatprep.subr.bf16.mxu0 0
    %357 = vmatpush1.bf16.msra.mxu0 %v339
    %358 = vmatprep.subr.bf16.mxu0 0
    %359 = vmatpush1.bf16.msra.mxu0 %v340
    %360 = vmatprep.subr.bf16.mxu0 0
    %361 = vmatpush1.bf16.msra.mxu0 %v341
    %362 = vmatprep.subr.bf16.mxu0 0
    %363 = vmatpush1.bf16.msra.mxu0 %v342
    %364 = vmatprep.subr.bf16.mxu0 0
    %365 = vmatpush1.bf16.msra.mxu0 %v343
    %366 = vmatprep.subr.bf16.mxu0 0
    %367 = vmatpush1.bf16.msra.mxu0 %v344
    %368 = vmatprep.subr.bf16.mxu0 0
    %369 = vmatpush1.bf16.msra.mxu0 %v345
    %370 = vmatprep.subr.bf16.mxu0 0
    %371 = vmatpush1.bf16.msra.mxu0 0
    %372 = vmatprep.subr.bf16.mxu0 0
    %373 = vmatpush1.bf16.msra.mxu0 0
    %374 = vmatprep.subr.bf16.mxu0 0
    %375 = vmatpush1.bf16.msra.mxu0 0
    %376 = vmatprep.subr.bf16.mxu0 0
    %377 = vmatpush1.bf16.msra.mxu0 0
    %378 = vmatprep.subr.bf16.mxu0 0
    %379 = vmatpush1.bf16.msra.mxu0 0
    %380 = vmatprep.subr.bf16.mxu0 0
    %381 = vmatpush1.bf16.msra.mxu0 0
    %382 = vmatprep.subr.bf16.mxu0 0
    %383 = vmatpush1.bf16.msra.mxu0 0
    %384 = vmatprep.subr.bf16.mxu0 0
    %385 = vmatpush1.bf16.msra.mxu0 0
    %386 = vmatprep.mubr.bf16.mxu0 0
    %387 = vmatmul.mubr.bf16.gmra.mrb[0].mxu0 %v289
    %v388 = vpop.f32.mrb[0].mxu0
    %v389 = vadd.f32 0.0, %v388
    %v390 = vpop.f32.mrb[0].mxu0
    %v391 = vpop.f32.mrb[0].mxu0
    %v392 = vpop.f32.mrb[0].mxu0
    %393 = vdwg.mxu0
    %v394 = vmax.f32 %v389, 0.0
    %v395 = vmul.f32 %v394, %v394
    %v396 = vld [vmem:[#allocation4] sm:$0xff]
    %v397 = vpack.c.bf16 %v395, %v395
    %v398 = vld [vmem:[#allocation13] sm:$0xf]
    %v399 = vld [vmem:[#allocation13 + $0x4] sm:$0xf]
    %v400 = vld [vmem:[#allocation13 + $0x8] sm:$0xf]
    %v401 = vld [vmem:[#allocation13 + $0xc] sm:$0xf]
    %v402 = vld [vmem:[#allocation13 + $0x10] sm:$0xf]
    %v403 = vld [vmem:[#allocation13 + $0x14] sm:$0xf]
    %v404 = vld [vmem:[#allocation13 + $0x18] sm:$0xf]
    %v405 = vld [vmem:[#allocation13 + $0x1c] sm:$0xf]
    %v406 = vld [vmem:[#allocation13 + $0x20] sm:$0xf]
    %v407 = vld [vmem:[#allocation13 + $0x24] sm:$0xf]
    %v408 = vld [vmem:[#allocation13 + $0x28] sm:$0xf]
    %v409 = vld [vmem:[#allocation13 + $0x2c] sm:$0xf]
    %v410 = vld [vmem:[#allocation13 + $0x30] sm:$0xf]
    %v411 = vld [vmem:[#allocation13 + $0x34] sm:$0xf]
    %v412 = vld [vmem:[#allocation13 + $0x38] sm:$0xf]
    %v413 = vld [vmem:[#allocation13 + $0x3c] sm:$0xf]
    %v430 = vunpack.c.l.b16 %v398
    %v431 = vunpack.c.l.b16 %v399
    %v432 = vunpack.c.l.b16 %v400
    %v433 = vunpack.c.l.b16 %v401
    %v434 = vunpack.c.l.b16 %v402
    %v435 = vunpack.c.l.b16 %v403
    %v436 = vunpack.c.l.b16 %v404
    %v437 = vunpack.c.l.b16 %v405
    %v438 = vunpack.c.l.b16 %v406
    %v439 = vunpack.c.l.b16 %v407
    %v440 = vunpack.c.l.b16 %v408
    %v441 = vunpack.c.l.b16 %v409
    %v442 = vunpack.c.l.b16 %v410
    %v443 = vunpack.c.l.b16 %v411
    %v444 = vunpack.c.l.b16 %v412
    %v445 = vunpack.c.l.b16 %v413
    %v446 = vpack.c.b16 %v431, %v430
    %v447 = vpack.c.b16 %v433, %v432
    %v448 = vpack.c.b16 %v435, %v434
    %v449 = vpack.c.b16 %v437, %v436
    %v450 = vpack.c.b16 %v439, %v438
    %v451 = vpack.c.b16 %v441, %v440
    %v452 = vpack.c.b16 %v443, %v442
    %v453 = vpack.c.b16 %v445, %v444
    %462 = vmatprep.subr.bf16.mxu0 0
    %463 = vmatpush1.bf16.msra.mxu0 %v446
    %464 = vmatprep.subr.bf16.mxu0 0
    %465 = vmatpush1.bf16.msra.mxu0 %v447
    %466 = vmatprep.subr.bf16.mxu0 0
    %467 = vmatpush1.bf16.msra.mxu0 %v448
    %468 = vmatprep.subr.bf16.mxu0 0
    %469 = vmatpush1.bf16.msra.mxu0 %v449
    %470 = vmatprep.subr.bf16.mxu0 0
    %471 = vmatpush1.bf16.msra.mxu0 %v450
    %472 = vmatprep.subr.bf16.mxu0 0
    %473 = vmatpush1.bf16.msra.mxu0 %v451
    %474 = vmatprep.subr.bf16.mxu0 0
    %475 = vmatpush1.bf16.msra.mxu0 %v452
    %476 = vmatprep.subr.bf16.mxu0 0
    %477 = vmatpush1.bf16.msra.mxu0 %v453
    %478 = vmatprep.subr.bf16.mxu0 0
    %479 = vmatpush1.bf16.msra.mxu0 0
    %480 = vmatprep.subr.bf16.mxu0 0
    %481 = vmatpush1.bf16.msra.mxu0 0
    %482 = vmatprep.subr.bf16.mxu0 0
    %483 = vmatpush1.bf16.msra.mxu0 0
    %484 = vmatprep.subr.bf16.mxu0 0
    %485 = vmatpush1.bf16.msra.mxu0 0
    %486 = vmatprep.subr.bf16.mxu0 0
    %487 = vmatpush1.bf16.msra.mxu0 0
    %488 = vmatprep.subr.bf16.mxu0 0
    %489 = vmatpush1.bf16.msra.mxu0 0
    %490 = vmatprep.subr.bf16.mxu0 0
    %491 = vmatpush1.bf16.msra.mxu0 0
    %492 = vmatprep.subr.bf16.mxu0 0
    %493 = vmatpush1.bf16.msra.mxu0 0
    %494 = vmatprep.mubr.bf16.mxu0 0
    %495 = vmatmul.mubr.bf16.gmra.mrb[0].mxu0 %v397
    %v496 = vpop.f32.mrb[0].mxu0
    %v497 = vadd.f32 0.0, %v496
    %v498 = vpop.f32.mrb[0].mxu0
    %v499 = vpop.f32.mrb[0].mxu0
    %v500 = vpop.f32.mrb[0].mxu0
    %501 = vdwg.mxu0
    %v502 = vadd.f32 %v396, %v497
    %503 = vst [vmem:[#allocation4] sm:$0xff] %v502
    // Predicated region
    $region50: #{tpu_custom_call.1} parent=1 // pred_check
      %p504 = pneg %p92
    $region51: #{tpu_custom_call.1} parent=1 // pred_check_branch
      %506 = sbr.rel (%p504) target = $region53
    $region52: #{tpu_custom_call.1} parent=1 // pred_region
      %v507 = vld [vmem:[#allocation3] sm:$0xff]
      %v508 = vld [vmem:[#allocation4] sm:$0xff]
      %v509 = vmul.f32 %v507, %v508
      %v510 = vld [vmem:[#allocation5] sm:$0xff]
      %v511 = vadd.f32 %v509, %v510
      %512 = vst [vmem:[#allocation14] sm:$0xff] %v511
    $region53: #{tpu_custom_call.1} parent=1 // pred_fallthru
      _
    // Predicated region
    $region54: #{tpu_custom_call.1} parent=1 // pred_check
      _
    $region55: #{tpu_custom_call.1} parent=1 // pred_check_branch
      %514 = sbr.rel (0) target = $region57
    $region56: #{tpu_custom_call.1} parent=1 // pred_region
      %s516 = ssub.s32 128, 128
      %517 = vsyncadd [#allocation7], %s516
      %s519 = sshll.u32 [#allocation14], 4
      %s520 = int_to_ptr.vmem [resolvable:$true] %s519
      %522 = dma.vmem_to_hbm [thread:$0]  %s520, 128, %s6, [#allocation7]
    $region57: #{tpu_custom_call.1} parent=1 // pred_fallthru
      _
    // Predicated region
    $region58: #{tpu_custom_call.1} parent=1 // pred_check
      _
    $region59: #{tpu_custom_call.1} parent=1 // pred_check_branch
      %524 = sbr.rel (0) target = $region61
    $region60: #{tpu_custom_call.1} parent=1 // pred_region
      %s526 = ssub.s32 16, 16
      %527 = vsyncadd [#allocation16], %s526
      %s529 = sshll.u32 [#allocation15], 4
      %s530 = int_to_ptr.vmem [resolvable:$true] %s529
      %532 = dma.vmem_to_hbm [thread:$0]  %s530, 16, %s7, [#allocation16]
    $region61: #{tpu_custom_call.1} parent=1 // pred_fallthru
      _
    // Predicated region
    $region62: #{tpu_custom_call.1} parent=1 // pred_check
      _
    $region63: #{tpu_custom_call.1} parent=1 // pred_check_branch
      %534 = sbr.rel (0) target = $region65
    $region64: #{tpu_custom_call.1} parent=1 // pred_region
      %535 = dma.done [#allocation7], 128
    $region65: #{tpu_custom_call.1} parent=1 // pred_fallthru
      _
    // Predicated region
    $region66: #{tpu_custom_call.1} parent=1 // pred_check
      _
    $region67: #{tpu_custom_call.1} parent=1 // pred_check_branch
      %537 = sbr.rel (0) target = $region69
    $region68: #{tpu_custom_call.1} parent=1 // pred_region
      %538 = dma.done [#allocation16], 16
    $region69: #{tpu_custom_call.1} parent=1 // pred_fallthru
      _
    %539 = vsyncpa [#allocation6], 1
    %540 = vsyncpa [#allocation9], 1
    %541 = vsyncpa [#allocation12], 1
    %542 = vsyncpa [#allocation7], 1
    %543 = vsyncpa [#allocation16], 1

</llo_original>
